<compile_context>
chip_gen: v7x
topology: tpu7x:2x2x1
jax: 0.10.0
libtpu: 0.0.40
codegen_flags: <defaults>
</compile_context>

<pallas_src>
import functools

import jax
import jax.numpy as jnp
import numpy as np
from jax import lax
from jax.experimental import pallas as pl
from jax.experimental.pallas import tpu as pltpu

EPS = 1e-5


# ------------------------------- fused kernel --------------------------------

def _bottleneck_kernel(x_ref, mask_ref, w1_ref, s1_ref, b1_ref,
                       w2_ref, s2_ref, b2_ref, w3_ref, s3_ref, b3_ref,
                       o_ref, ybuf, *, H, W, dil):
    """One image per grid step; all intermediates stay in VMEM, (C, M) layout.

    x_ref:    (1, Cin, M)        NCHW slab (f32)
    mask_ref: (9, M)             bf16 per-tap zero-padding validity masks
    w1_ref:   (planes, Cin)      bf16  (conv1 weight, pre-transposed)
    w2_ref:   (9, planes, planes) bf16 (conv2 taps, (co, ci) per tap)
    w3_ref:   (C4, planes)       bf16  (conv3 weight, pre-transposed)
    s*/b*:    folded BN scale/bias, (C, 1) f32 (lane-broadcast)
    o_ref:    (1, C4, M)         NCHW slab output (f32)
    ybuf:     VMEM (planes, M + 2*margin) bf16 scratch for the 3x3 taps
    """
    planes = w1_ref.shape[0]
    M = H * W
    margin = dil * (W + 1)

    x = x_ref[0]                                   # (Cin, M) f32 (residual path)
    xb = x.astype(jnp.bfloat16)

    # ---- conv1 (1x1) + bn1 + relu -> (planes, M) -----------------------------
    y1 = lax.dot_general(w1_ref[...], xb, (((1,), (0,)), ((), ())),
                         preferred_element_type=jnp.float32)
    y1 = jnp.maximum(y1 * s1_ref[...] + b1_ref[...], 0.0)

    # Stage y1 (bf16) into the flat scratch; zero only the margin strips
    # (interior is fully overwritten every step).
    ybuf[:, :margin] = jnp.zeros((planes, margin), jnp.bfloat16)
    ybuf[:, margin + M:] = jnp.zeros((planes, margin), jnp.bfloat16)
    ybuf[:, margin:margin + M] = y1.astype(jnp.bfloat16)

    # ---- conv2 (3x3, padding=dil, dilation=dil, stride=1) + bn2 + relu -------
    # 9 accumulated MXU matmuls; each tap is a contiguous lane-window read of
    # the staged slab, multiplied by a precomputed validity mask (zero padding).
    acc = jnp.zeros((planes, M), jnp.float32)
    for kh in range(3):
        for kw in range(3):
            t = kh * 3 + kw
            off = margin + (kh - 1) * dil * W + (kw - 1) * dil
            tap = ybuf[:, off:off + M] * mask_ref[t:t + 1, :]   # (planes, M) bf16
            acc = acc + lax.dot_general(w2_ref[t], tap,
                                        (((1,), (0,)), ((), ())),
                                        preferred_element_type=jnp.float32)
    y2 = jnp.maximum(acc * s2_ref[...] + b2_ref[...], 0.0).astype(jnp.bfloat16)

    # ---- conv3 (1x1) + bn3 + identity residual + relu -> (C4, M) -------------
    y3 = lax.dot_general(w3_ref[...], y2, (((1,), (0,)), ((), ())),
                         preferred_element_type=jnp.float32)
    y3 = y3 * s3_ref[...] + b3_ref[...] + x
    o_ref[0] = jnp.maximum(y3, 0.0).astype(o_ref.dtype)


# -------------------------------- wrapper ------------------------------------

def _bn_fold(gamma, beta, mean, var):
    scale = gamma / jnp.sqrt(var + EPS)
    bias = beta - mean * scale
    return scale, bias


def bottleneck_forward(x_nchw, params, *, stride=1, dilation=1):
    # TODO(synk): stride > 1 (strided 3x3) and the downsample residual path are
    # not implemented; the module defaults (stride=1, downsample=None) are.
    assert stride == 1
    assert dilation >= 1
    N, Cin, H, W = x_nchw.shape
    d = dilation
    M = H * W
    planes = params["w1"].shape[1]
    C4 = planes * 4
    assert Cin == C4, "downsample=None requires inplanes == planes * 4"

    s1, b1 = _bn_fold(*params["bn1"])
    s2, b2 = _bn_fold(*params["bn2"])
    s3, b3 = _bn_fold(*params["bn3"])
    s1, b1 = s1.reshape(planes, 1), b1.reshape(planes, 1)
    s2, b2 = s2.reshape(planes, 1), b2.reshape(planes, 1)
    s3, b3 = s3.reshape(C4, 1), b3.reshape(C4, 1)

    # Weights in (Cout, Cin) "left-matmul" orientation, cast to bf16 for the MXU.
    w1t = params["w1"].T.astype(jnp.bfloat16)                         # (planes, Cin)
    w2t = jnp.transpose(params["w2"], (0, 1, 3, 2)) \
             .reshape(9, planes, planes).astype(jnp.bfloat16)         # (9, co, ci)
    w3t = params["w3"].T.astype(jnp.bfloat16)                         # (C4, planes)

    # Per-tap validity masks for the 3x3 conv's zero padding, hoisted out of the
    # kernel (shape (9, M), one (1, M) lane-broadcast multiply per tap inside).
    ii = jnp.arange(H, dtype=jnp.int32).reshape(H, 1)
    jj = jnp.arange(W, dtype=jnp.int32).reshape(1, W)
    masks = []
    for kh in range(3):
        for kw in range(3):
            r = ii + (kh - 1) * d
            c = jj + (kw - 1) * d
            valid = (r >= 0) & (r < H) & (c >= 0) & (c < W)
            masks.append(valid.reshape(M))
    mask9 = jnp.stack(masks).astype(jnp.bfloat16)                     # (9, M)

    x3 = x_nchw.reshape(N, Cin, M)          # free reshape of the NCHW slab
    margin = d * (W + 1)

    kernel = functools.partial(_bottleneck_kernel, H=H, W=W, dil=d)

    flops = 2 * N * M * (Cin * planes + 9 * planes * planes + planes * C4)
    bytes_accessed = (4 * (x3.size + N * C4 * M)
                      + 2 * (w1t.size + w2t.size + w3t.size + mask9.size)
                      + 4 * 2 * (2 * planes + C4))

    out = pl.pallas_call(
        kernel,
        out_shape=jax.ShapeDtypeStruct((N, C4, M), x_nchw.dtype),
        grid=(N,),
        in_specs=[
            pl.BlockSpec((1, Cin, M), lambda n: (n, 0, 0)),            # x
            pl.BlockSpec((9, M), lambda n: (0, 0)),                    # tap masks
            pl.BlockSpec((planes, Cin), lambda n: (0, 0)),             # w1^T
            pl.BlockSpec((planes, 1), lambda n: (0, 0)),               # s1
            pl.BlockSpec((planes, 1), lambda n: (0, 0)),               # b1
            pl.BlockSpec((9, planes, planes), lambda n: (0, 0, 0)),    # w2 taps
            pl.BlockSpec((planes, 1), lambda n: (0, 0)),               # s2
            pl.BlockSpec((planes, 1), lambda n: (0, 0)),               # b2
            pl.BlockSpec((C4, planes), lambda n: (0, 0)),              # w3^T
            pl.BlockSpec((C4, 1), lambda n: (0, 0)),                   # s3
            pl.BlockSpec((C4, 1), lambda n: (0, 0)),                   # b3
        ],
        out_specs=pl.BlockSpec((1, C4, M), lambda n: (n, 0, 0)),
        scratch_shapes=[pltpu.VMEM((planes, M + 2 * margin), jnp.bfloat16)],
        compiler_params=pltpu.CompilerParams(
            dimension_semantics=("parallel",),
            # bf16 staging keeps the per-step working set small; 48 MiB is safe
            # on all generations (v7x has 64 MiB physical per TensorCore).
            vmem_limit_bytes=48 * 1024 * 1024),
        cost_estimate=pl.CostEstimate(
            flops=flops, transcendentals=0, bytes_accessed=bytes_accessed),
    )(x3, mask9, w1t, s1, b1, w2t, s2, b2, w3t, s3, b3)

    return out.reshape(N, C4, H, W)


# ---------------------------- pure-JAX reference ------------------------------

def _ref_forward(x_nchw, params, *, stride=1, dilation=1):
    HI = jax.lax.Precision.HIGHEST
    x = jnp.transpose(x_nchw, (0, 2, 3, 1)).astype(jnp.float32)

    def bn(y, g, b, m, v):
        return g / jnp.sqrt(v + EPS) * (y - m) + b

    o = jnp.einsum("nhwc,co->nhwo", x, params["w1"], precision=HI)
    o = jax.nn.relu(bn(o, *params["bn1"]))
    o = jax.lax.conv_general_dilated(
        o, params["w2"], window_strides=(stride, stride),
        padding=[(dilation, dilation)] * 2, rhs_dilation=(dilation, dilation),
        dimension_numbers=("NHWC", "HWIO", "NHWC"), precision=HI)
    o = jax.nn.relu(bn(o, *params["bn2"]))
    o = jnp.einsum("nhwc,co->nhwo", o, params["w3"], precision=HI)
    o = jax.nn.relu(bn(o, *params["bn3"]) + x)
    return jnp.transpose(o, (0, 3, 1, 2))


# ----------------------------------- main -------------------------------------

if __name__ == "__main__":
    # Bottleneck(inplanes=32, planes=8): expansion 4 -> 32 output channels, so
    # the identity residual is valid (downsample=None).
    inplanes, planes = 32, 8
    N, H, W = 2, 16, 16

    key = jax.random.PRNGKey(0)
    ks = jax.random.split(key, 8)

    def bn_params(k, c):
        k1, k2, k3, k4 = jax.random.split(k, 4)
        gamma = 1.0 + 0.1 * jax.random.normal(k1, (c,), jnp.float32)
        beta = 0.1 * jax.random.normal(k2, (c,), jnp.float32)
        mean = 0.1 * jax.random.normal(k3, (c,), jnp.float32)
        var = jnp.abs(jax.random.normal(k4, (c,), jnp.float32)) + 0.5
        return gamma, beta, mean, var

    params = {
        # channels-last weight storage: (Cin, Cout) for 1x1, HWIO for 3x3
        "w1": 0.1 * jax.random.normal(ks[0], (inplanes, planes), jnp.float32),
        "w2": 0.1 * jax.random.normal(ks[1], (3, 3, planes, planes), jnp.float32),
        "w3": 0.1 * jax.random.normal(ks[2], (planes, planes * 4), jnp.float32),
        "bn1": bn_params(ks[3], planes),
        "bn2": bn_params(ks[4], planes),
        "bn3": bn_params(ks[5], planes * 4),
    }

    x = jax.random.normal(ks[6], (N, inplanes, H, W), jnp.float32)

    out = jax.block_until_ready(bottleneck_forward(x, params, stride=1, dilation=1))
    ref = jax.block_until_ready(_ref_forward(x, params, stride=1, dilation=1))

    assert out.shape == (N, inplanes, H, W)
    # kernel runs the MXU in bf16 with f32 accumulation; reference is HIGHEST
    # precision f32, so allow a small tolerance (residual path stays f32-exact).
    np.testing.assert_allclose(np.asarray(out), np.asarray(ref), rtol=2e-2, atol=2e-2)

    print("KERNEL_OK")
</pallas_src>

<mosaic_0001>
module attributes {stable_mosaic.version = 11 : i64} {
  func.func @_bottleneck_kernel(%arg0: i32, %arg1: memref<1x32x256xf32, #tpu.memory_space<vmem>>, %arg2: memref<9x256xbf16, #tpu.memory_space<vmem>>, %arg3: memref<8x32xbf16, #tpu.memory_space<vmem>>, %arg4: memref<8x1xf32, #tpu.memory_space<vmem>>, %arg5: memref<8x1xf32, #tpu.memory_space<vmem>>, %arg6: memref<9x8x8xbf16, #tpu.memory_space<vmem>>, %arg7: memref<8x1xf32, #tpu.memory_space<vmem>>, %arg8: memref<8x1xf32, #tpu.memory_space<vmem>>, %arg9: memref<32x8xbf16, #tpu.memory_space<vmem>>, %arg10: memref<32x1xf32, #tpu.memory_space<vmem>>, %arg11: memref<32x1xf32, #tpu.memory_space<vmem>>, %arg12: memref<1x32x256xf32, #tpu.memory_space<vmem>>, %arg13: memref<8x290xbf16, #tpu.memory_space<vmem>>) attributes {dimension_semantics = [#tpu.dimension_semantics<parallel>], iteration_bounds = array<i64: 2>, scalar_prefetch = 0 : i64, scratch_operands = 1 : i64, tpu.core_type = #tpu.core_type<tc>, window_params = [{transform_indices = @transform_0, window_bounds = array<i64: 1, 32, 256>}, {pipeline_mode = #tpu.pipeline_mode<synchronous>, transform_indices = @transform_1, window_bounds = array<i64: 9, 256>}, {pipeline_mode = #tpu.pipeline_mode<synchronous>, transform_indices = @transform_2, window_bounds = array<i64: 8, 32>}, {pipeline_mode = #tpu.pipeline_mode<synchronous>, transform_indices = @transform_3, window_bounds = array<i64: 8, 1>}, {pipeline_mode = #tpu.pipeline_mode<synchronous>, transform_indices = @transform_4, window_bounds = array<i64: 8, 1>}, {pipeline_mode = #tpu.pipeline_mode<synchronous>, transform_indices = @transform_5, window_bounds = array<i64: 9, 8, 8>}, {pipeline_mode = #tpu.pipeline_mode<synchronous>, transform_indices = @transform_6, window_bounds = array<i64: 8, 1>}, {pipeline_mode = #tpu.pipeline_mode<synchronous>, transform_indices = @transform_7, window_bounds = array<i64: 8, 1>}, {pipeline_mode = #tpu.pipeline_mode<synchronous>, transform_indices = @transform_8, window_bounds = array<i64: 32, 8>}, {pipeline_mode = #tpu.pipeline_mode<synchronous>, transform_indices = @transform_9, window_bounds = array<i64: 32, 1>}, {pipeline_mode = #tpu.pipeline_mode<synchronous>, transform_indices = @transform_10, window_bounds = array<i64: 32, 1>}, {transform_indices = @transform_11, window_bounds = array<i64: 1, 32, 256>}]} {
    %c0 = arith.constant 0 : index
    %c0_0 = arith.constant 0 : index
    %c0_1 = arith.constant 0 : index
    %0 = vector.load %arg1[%c0, %c0_0, %c0_1] : memref<1x32x256xf32, #tpu.memory_space<vmem>>, vector<1x32x256xf32>
    %1 = vector.shape_cast %0 : vector<1x32x256xf32> to vector<32x256xf32>
    %2 = arith.truncf %1 : vector<32x256xf32> to vector<32x256xbf16>
    %c0_2 = arith.constant 0 : index
    %c0_3 = arith.constant 0 : index
    %3 = vector.load %arg3[%c0_2, %c0_3] : memref<8x32xbf16, #tpu.memory_space<vmem>>, vector<8x32xbf16>
    %cst = arith.constant dense<0.000000e+00> : vector<8x256xf32>
    %4 = tpu.matmul %3, %2, %cst {dimension_numbers = #tpu.dot_dimension_numbers<[1], [0], [0], [1], [0, 0, 1, 1], [], []>} : vector<8x32xbf16>, vector<32x256xbf16>, vector<8x256xf32> -> vector<8x256xf32>
    %c0_4 = arith.constant 0 : index
    %c0_5 = arith.constant 0 : index
    %5 = vector.load %arg4[%c0_4, %c0_5] : memref<8x1xf32, #tpu.memory_space<vmem>>, vector<8x1xf32>
    %6 = vector.broadcast %5 : vector<8x1xf32> to vector<8x256xf32>
    %7 = arith.mulf %4, %6 : vector<8x256xf32>
    %c0_6 = arith.constant 0 : index
    %c0_7 = arith.constant 0 : index
    %8 = vector.load %arg5[%c0_6, %c0_7] : memref<8x1xf32, #tpu.memory_space<vmem>>, vector<8x1xf32>
    %9 = vector.broadcast %8 : vector<8x1xf32> to vector<8x256xf32>
    %10 = arith.addf %7, %9 : vector<8x256xf32>
    %cst_8 = arith.constant 0.000000e+00 : f32
    %11 = vector.broadcast %cst_8 : f32 to vector<8x256xf32>
    %12 = arith.maximumf %10, %11 : vector<8x256xf32>
    %cst_9 = arith.constant 0.000000e+00 : bf16
    %13 = vector.broadcast %cst_9 : bf16 to vector<8x17xbf16>
    %c0_10 = arith.constant 0 : index
    %c0_11 = arith.constant 0 : index
    %14 = vector.load %arg13[%c0_10, %c0_11] : memref<8x290xbf16, #tpu.memory_space<vmem>>, vector<8x17xbf16>
    tpu.vector_store %arg13[%c0_10, %c0_11], %13 {strides = array<i32>} : memref<8x290xbf16, #tpu.memory_space<vmem>>, vector<8x17xbf16>,
    %cst_12 = arith.constant 0.000000e+00 : bf16
    %15 = vector.broadcast %cst_12 : bf16 to vector<8x17xbf16>
    %c0_13 = arith.constant 0 : index
    %c273 = arith.constant 273 : index
    %16 = vector.load %arg13[%c0_13, %c273] : memref<8x290xbf16, #tpu.memory_space<vmem>>, vector<8x17xbf16>
    tpu.vector_store %arg13[%c0_13, %c273], %15 {strides = array<i32>} : memref<8x290xbf16, #tpu.memory_space<vmem>>, vector<8x17xbf16>,
    %17 = arith.truncf %12 : vector<8x256xf32> to vector<8x256xbf16>
    %c0_14 = arith.constant 0 : index
    %c17 = arith.constant 17 : index
    %18 = vector.load %arg13[%c0_14, %c17] : memref<8x290xbf16, #tpu.memory_space<vmem>>, vector<8x256xbf16>
    tpu.vector_store %arg13[%c0_14, %c17], %17 {strides = array<i32>} : memref<8x290xbf16, #tpu.memory_space<vmem>>, vector<8x256xbf16>,
    %cst_15 = arith.constant 0.000000e+00 : f32
    %19 = vector.broadcast %cst_15 : f32 to vector<8x256xf32>
    %c0_16 = arith.constant 0 : index
    %c0_17 = arith.constant 0 : index
    %20 = vector.load %arg13[%c0_16, %c0_17] : memref<8x290xbf16, #tpu.memory_space<vmem>>, vector<8x256xbf16>
    %c0_18 = arith.constant 0 : index
    %c0_19 = arith.constant 0 : index
    %21 = vector.load %arg2[%c0_18, %c0_19] : memref<9x256xbf16, #tpu.memory_space<vmem>>, vector<1x256xbf16>
    %22 = vector.broadcast %21 : vector<1x256xbf16> to vector<8x256xbf16>
    %23 = arith.mulf %20, %22 : vector<8x256xbf16>
    %c0_20 = arith.constant 0 : index
    %c0_21 = arith.constant 0 : index
    %c0_22 = arith.constant 0 : index
    %24 = vector.load %arg6[%c0_20, %c0_21, %c0_22] : memref<9x8x8xbf16, #tpu.memory_space<vmem>>, vector<1x8x8xbf16>
    %25 = vector.shape_cast %24 : vector<1x8x8xbf16> to vector<8x8xbf16>
    %cst_23 = arith.constant dense<0.000000e+00> : vector<8x256xf32>
    %26 = tpu.matmul %25, %23, %cst_23 {dimension_numbers = #tpu.dot_dimension_numbers<[1], [0], [0], [1], [0, 0, 1, 1], [], []>} : vector<8x8xbf16>, vector<8x256xbf16>, vector<8x256xf32> -> vector<8x256xf32>
    %27 = arith.addf %19, %26 : vector<8x256xf32>
    %c0_24 = arith.constant 0 : index
    %c1 = arith.constant 1 : index
    %28 = vector.load %arg13[%c0_24, %c1] : memref<8x290xbf16, #tpu.memory_space<vmem>>, vector<8x256xbf16>
    %c1_25 = arith.constant 1 : index
    %c0_26 = arith.constant 0 : index
    %29 = vector.load %arg2[%c1_25, %c0_26] : memref<9x256xbf16, #tpu.memory_space<vmem>>, vector<1x256xbf16>
    %30 = vector.broadcast %29 : vector<1x256xbf16> to vector<8x256xbf16>
    %31 = arith.mulf %28, %30 : vector<8x256xbf16>
    %c1_27 = arith.constant 1 : index
    %c0_28 = arith.constant 0 : index
    %c0_29 = arith.constant 0 : index
    %32 = vector.load %arg6[%c1_27, %c0_28, %c0_29] : memref<9x8x8xbf16, #tpu.memory_space<vmem>>, vector<1x8x8xbf16>
    %33 = vector.shape_cast %32 : vector<1x8x8xbf16> to vector<8x8xbf16>
    %cst_30 = arith.constant dense<0.000000e+00> : vector<8x256xf32>
    %34 = tpu.matmul %33, %31, %cst_30 {dimension_numbers = #tpu.dot_dimension_numbers<[1], [0], [0], [1], [0, 0, 1, 1], [], []>} : vector<8x8xbf16>, vector<8x256xbf16>, vector<8x256xf32> -> vector<8x256xf32>
    %35 = arith.addf %27, %34 : vector<8x256xf32>
    %c0_31 = arith.constant 0 : index
    %c2 = arith.constant 2 : index
    %36 = vector.load %arg13[%c0_31, %c2] : memref<8x290xbf16, #tpu.memory_space<vmem>>, vector<8x256xbf16>
    %c2_32 = arith.constant 2 : index
    %c0_33 = arith.constant 0 : index
    %37 = vector.load %arg2[%c2_32, %c0_33] : memref<9x256xbf16, #tpu.memory_space<vmem>>, vector<1x256xbf16>
    %38 = vector.broadcast %37 : vector<1x256xbf16> to vector<8x256xbf16>
    %39 = arith.mulf %36, %38 : vector<8x256xbf16>
    %c2_34 = arith.constant 2 : index
    %c0_35 = arith.constant 0 : index
    %c0_36 = arith.constant 0 : index
    %40 = vector.load %arg6[%c2_34, %c0_35, %c0_36] : memref<9x8x8xbf16, #tpu.memory_space<vmem>>, vector<1x8x8xbf16>
    %41 = vector.shape_cast %40 : vector<1x8x8xbf16> to vector<8x8xbf16>
    %cst_37 = arith.constant dense<0.000000e+00> : vector<8x256xf32>
    %42 = tpu.matmul %41, %39, %cst_37 {dimension_numbers = #tpu.dot_dimension_numbers<[1], [0], [0], [1], [0, 0, 1, 1], [], []>} : vector<8x8xbf16>, vector<8x256xbf16>, vector<8x256xf32> -> vector<8x256xf32>
    %43 = arith.addf %35, %42 : vector<8x256xf32>
    %c0_38 = arith.constant 0 : index
    %c16 = arith.constant 16 : index
    %44 = vector.load %arg13[%c0_38, %c16] : memref<8x290xbf16, #tpu.memory_space<vmem>>, vector<8x256xbf16>
    %c3 = arith.constant 3 : index
    %c0_39 = arith.constant 0 : index
    %45 = vector.load %arg2[%c3, %c0_39] : memref<9x256xbf16, #tpu.memory_space<vmem>>, vector<1x256xbf16>
    %46 = vector.broadcast %45 : vector<1x256xbf16> to vector<8x256xbf16>
    %47 = arith.mulf %44, %46 : vector<8x256xbf16>
    %c3_40 = arith.constant 3 : index
    %c0_41 = arith.constant 0 : index
    %c0_42 = arith.constant 0 : index
    %48 = vector.load %arg6[%c3_40, %c0_41, %c0_42] : memref<9x8x8xbf16, #tpu.memory_space<vmem>>, vector<1x8x8xbf16>
    %49 = vector.shape_cast %48 : vector<1x8x8xbf16> to vector<8x8xbf16>
    %cst_43 = arith.constant dense<0.000000e+00> : vector<8x256xf32>
    %50 = tpu.matmul %49, %47, %cst_43 {dimension_numbers = #tpu.dot_dimension_numbers<[1], [0], [0], [1], [0, 0, 1, 1], [], []>} : vector<8x8xbf16>, vector<8x256xbf16>, vector<8x256xf32> -> vector<8x256xf32>
    %51 = arith.addf %43, %50 : vector<8x256xf32>
    %c0_44 = arith.constant 0 : index
    %c17_45 = arith.constant 17 : index
    %52 = vector.load %arg13[%c0_44, %c17_45] : memref<8x290xbf16, #tpu.memory_space<vmem>>, vector<8x256xbf16>
    %c4 = arith.constant 4 : index
    %c0_46 = arith.constant 0 : index
    %53 = vector.load %arg2[%c4, %c0_46] : memref<9x256xbf16, #tpu.memory_space<vmem>>, vector<1x256xbf16>
    %54 = vector.broadcast %53 : vector<1x256xbf16> to vector<8x256xbf16>
    %55 = arith.mulf %52, %54 : vector<8x256xbf16>
    %c4_47 = arith.constant 4 : index
    %c0_48 = arith.constant 0 : index
    %c0_49 = arith.constant 0 : index
    %56 = vector.load %arg6[%c4_47, %c0_48, %c0_49] : memref<9x8x8xbf16, #tpu.memory_space<vmem>>, vector<1x8x8xbf16>
    %57 = vector.shape_cast %56 : vector<1x8x8xbf16> to vector<8x8xbf16>
    %cst_50 = arith.constant dense<0.000000e+00> : vector<8x256xf32>
    %58 = tpu.matmul %57, %55, %cst_50 {dimension_numbers = #tpu.dot_dimension_numbers<[1], [0], [0], [1], [0, 0, 1, 1], [], []>} : vector<8x8xbf16>, vector<8x256xbf16>, vector<8x256xf32> -> vector<8x256xf32>
    %59 = arith.addf %51, %58 : vector<8x256xf32>
    %c0_51 = arith.constant 0 : index
    %c18 = arith.constant 18 : index
    %60 = vector.load %arg13[%c0_51, %c18] : memref<8x290xbf16, #tpu.memory_space<vmem>>, vector<8x256xbf16>
    %c5 = arith.constant 5 : index
    %c0_52 = arith.constant 0 : index
    %61 = vector.load %arg2[%c5, %c0_52] : memref<9x256xbf16, #tpu.memory_space<vmem>>, vector<1x256xbf16>
    %62 = vector.broadcast %61 : vector<1x256xbf16> to vector<8x256xbf16>
    %63 = arith.mulf %60, %62 : vector<8x256xbf16>
    %c5_53 = arith.constant 5 : index
    %c0_54 = arith.constant 0 : index
    %c0_55 = arith.constant 0 : index
    %64 = vector.load %arg6[%c5_53, %c0_54, %c0_55] : memref<9x8x8xbf16, #tpu.memory_space<vmem>>, vector<1x8x8xbf16>
    %65 = vector.shape_cast %64 : vector<1x8x8xbf16> to vector<8x8xbf16>
    %cst_56 = arith.constant dense<0.000000e+00> : vector<8x256xf32>
    %66 = tpu.matmul %65, %63, %cst_56 {dimension_numbers = #tpu.dot_dimension_numbers<[1], [0], [0], [1], [0, 0, 1, 1], [], []>} : vector<8x8xbf16>, vector<8x256xbf16>, vector<8x256xf32> -> vector<8x256xf32>
    %67 = arith.addf %59, %66 : vector<8x256xf32>
    %c0_57 = arith.constant 0 : index
    %c32 = arith.constant 32 : index
    %68 = vector.load %arg13[%c0_57, %c32] : memref<8x290xbf16, #tpu.memory_space<vmem>>, vector<8x256xbf16>
    %c6 = arith.constant 6 : index
    %c0_58 = arith.constant 0 : index
    %69 = vector.load %arg2[%c6, %c0_58] : memref<9x256xbf16, #tpu.memory_space<vmem>>, vector<1x256xbf16>
    %70 = vector.broadcast %69 : vector<1x256xbf16> to vector<8x256xbf16>
    %71 = arith.mulf %68, %70 : vector<8x256xbf16>
    %c6_59 = arith.constant 6 : index
    %c0_60 = arith.constant 0 : index
    %c0_61 = arith.constant 0 : index
    %72 = vector.load %arg6[%c6_59, %c0_60, %c0_61] : memref<9x8x8xbf16, #tpu.memory_space<vmem>>, vector<1x8x8xbf16>
    %73 = vector.shape_cast %72 : vector<1x8x8xbf16> to vector<8x8xbf16>
    %cst_62 = arith.constant dense<0.000000e+00> : vector<8x256xf32>
    %74 = tpu.matmul %73, %71, %cst_62 {dimension_numbers = #tpu.dot_dimension_numbers<[1], [0], [0], [1], [0, 0, 1, 1], [], []>} : vector<8x8xbf16>, vector<8x256xbf16>, vector<8x256xf32> -> vector<8x256xf32>
    %75 = arith.addf %67, %74 : vector<8x256xf32>
    %c0_63 = arith.constant 0 : index
    %c33 = arith.constant 33 : index
    %76 = vector.load %arg13[%c0_63, %c33] : memref<8x290xbf16, #tpu.memory_space<vmem>>, vector<8x256xbf16>
    %c7 = arith.constant 7 : index
    %c0_64 = arith.constant 0 : index
    %77 = vector.load %arg2[%c7, %c0_64] : memref<9x256xbf16, #tpu.memory_space<vmem>>, vector<1x256xbf16>
    %78 = vector.broadcast %77 : vector<1x256xbf16> to vector<8x256xbf16>
    %79 = arith.mulf %76, %78 : vector<8x256xbf16>
    %c7_65 = arith.constant 7 : index
    %c0_66 = arith.constant 0 : index
    %c0_67 = arith.constant 0 : index
    %80 = vector.load %arg6[%c7_65, %c0_66, %c0_67] : memref<9x8x8xbf16, #tpu.memory_space<vmem>>, vector<1x8x8xbf16>
    %81 = vector.shape_cast %80 : vector<1x8x8xbf16> to vector<8x8xbf16>
    %cst_68 = arith.constant dense<0.000000e+00> : vector<8x256xf32>
    %82 = tpu.matmul %81, %79, %cst_68 {dimension_numbers = #tpu.dot_dimension_numbers<[1], [0], [0], [1], [0, 0, 1, 1], [], []>} : vector<8x8xbf16>, vector<8x256xbf16>, vector<8x256xf32> -> vector<8x256xf32>
    %83 = arith.addf %75, %82 : vector<8x256xf32>
    %c0_69 = arith.constant 0 : index
    %c34 = arith.constant 34 : index
    %84 = vector.load %arg13[%c0_69, %c34] : memref<8x290xbf16, #tpu.memory_space<vmem>>, vector<8x256xbf16>
    %c8 = arith.constant 8 : index
    %c0_70 = arith.constant 0 : index
    %85 = vector.load %arg2[%c8, %c0_70] : memref<9x256xbf16, #tpu.memory_space<vmem>>, vector<1x256xbf16>
    %86 = vector.broadcast %85 : vector<1x256xbf16> to vector<8x256xbf16>
    %87 = arith.mulf %84, %86 : vector<8x256xbf16>
    %c8_71 = arith.constant 8 : index
    %c0_72 = arith.constant 0 : index
    %c0_73 = arith.constant 0 : index
    %88 = vector.load %arg6[%c8_71, %c0_72, %c0_73] : memref<9x8x8xbf16, #tpu.memory_space<vmem>>, vector<1x8x8xbf16>
    %89 = vector.shape_cast %88 : vector<1x8x8xbf16> to vector<8x8xbf16>
    %cst_74 = arith.constant dense<0.000000e+00> : vector<8x256xf32>
    %90 = tpu.matmul %89, %87, %cst_74 {dimension_numbers = #tpu.dot_dimension_numbers<[1], [0], [0], [1], [0, 0, 1, 1], [], []>} : vector<8x8xbf16>, vector<8x256xbf16>, vector<8x256xf32> -> vector<8x256xf32>
    %91 = arith.addf %83, %90 : vector<8x256xf32>
    %c0_75 = arith.constant 0 : index
    %c0_76 = arith.constant 0 : index
    %92 = vector.load %arg7[%c0_75, %c0_76] : memref<8x1xf32, #tpu.memory_space<vmem>>, vector<8x1xf32>
    %93 = vector.broadcast %92 : vector<8x1xf32> to vector<8x256xf32>
    %94 = arith.mulf %91, %93 : vector<8x256xf32>
    %c0_77 = arith.constant 0 : index
    %c0_78 = arith.constant 0 : index
    %95 = vector.load %arg8[%c0_77, %c0_78] : memref<8x1xf32, #tpu.memory_space<vmem>>, vector<8x1xf32>
    %96 = vector.broadcast %95 : vector<8x1xf32> to vector<8x256xf32>
    %97 = arith.addf %94, %96 : vector<8x256xf32>
    %cst_79 = arith.constant 0.000000e+00 : f32
    %98 = vector.broadcast %cst_79 : f32 to vector<8x256xf32>
    %99 = arith.maximumf %97, %98 : vector<8x256xf32>
    %100 = arith.truncf %99 : vector<8x256xf32> to vector<8x256xbf16>
    %c0_80 = arith.constant 0 : index
    %c0_81 = arith.constant 0 : index
    %101 = vector.load %arg9[%c0_80, %c0_81] : memref<32x8xbf16, #tpu.memory_space<vmem>>, vector<32x8xbf16>
    %cst_82 = arith.constant dense<0.000000e+00> : vector<32x256xf32>
    %102 = tpu.matmul %101, %100, %cst_82 {dimension_numbers = #tpu.dot_dimension_numbers<[1], [0], [0], [1], [0, 0, 1, 1], [], []>} : vector<32x8xbf16>, vector<8x256xbf16>, vector<32x256xf32> -> vector<32x256xf32>
    %c0_83 = arith.constant 0 : index
    %c0_84 = arith.constant 0 : index
    %103 = vector.load %arg10[%c0_83, %c0_84] : memref<32x1xf32, #tpu.memory_space<vmem>>, vector<32x1xf32>
    %104 = vector.broadcast %103 : vector<32x1xf32> to vector<32x256xf32>
    %105 = arith.mulf %102, %104 : vector<32x256xf32>
    %c0_85 = arith.constant 0 : index
    %c0_86 = arith.constant 0 : index
    %106 = vector.load %arg11[%c0_85, %c0_86] : memref<32x1xf32, #tpu.memory_space<vmem>>, vector<32x1xf32>
    %107 = vector.broadcast %106 : vector<32x1xf32> to vector<32x256xf32>
    %108 = arith.addf %105, %107 : vector<32x256xf32>
    %109 = arith.addf %108, %1 : vector<32x256xf32>
    %cst_87 = arith.constant 0.000000e+00 : f32
    %110 = vector.broadcast %cst_87 : f32 to vector<32x256xf32>
    %111 = arith.maximumf %109, %110 : vector<32x256xf32>
    %c0_88 = arith.constant 0 : index
    %c0_89 = arith.constant 0 : index
    %c0_90 = arith.constant 0 : index
    %112 = vector.load %arg12[%c0_88, %c0_89, %c0_90] : memref<1x32x256xf32, #tpu.memory_space<vmem>>, vector<1x32x256xf32>
    %113 = vector.shape_cast %112 : vector<1x32x256xf32> to vector<32x256xf32>
    %114 = vector.shape_cast %111 : vector<32x256xf32> to vector<1x32x256xf32>
    tpu.vector_store %arg12[%c0_88, %c0_89, %c0_90], %114 {strides = array<i32>} : memref<1x32x256xf32, #tpu.memory_space<vmem>>, vector<1x32x256xf32>,
    return
  }
  func.func @transform_0(%arg0: i32) -> (i32, i32, i32) {
    %c0_i32 = arith.constant 0 : i32
    %c0_i32_0 = arith.constant 0 : i32
    %c0_i32_1 = arith.constant 0 : i32
    return %arg0, %c0_i32, %c0_i32_0 : i32, i32, i32
  }
  func.func @transform_1(%arg0: i32) -> (i32, i32) {
    %c0_i32 = arith.constant 0 : i32
    %c0_i32_0 = arith.constant 0 : i32
    %c0_i32_1 = arith.constant 0 : i32
    return %c0_i32, %c0_i32_0 : i32, i32
  }
  func.func @transform_2(%arg0: i32) -> (i32, i32) {
    %c0_i32 = arith.constant 0 : i32
    %c0_i32_0 = arith.constant 0 : i32
    %c0_i32_1 = arith.constant 0 : i32
    return %c0_i32, %c0_i32_0 : i32, i32
  }
  func.func @transform_3(%arg0: i32) -> (i32, i32) {
    %c0_i32 = arith.constant 0 : i32
    %c0_i32_0 = arith.constant 0 : i32
    %c0_i32_1 = arith.constant 0 : i32
    return %c0_i32, %c0_i32_0 : i32, i32
  }
  func.func @transform_4(%arg0: i32) -> (i32, i32) {
    %c0_i32 = arith.constant 0 : i32
    %c0_i32_0 = arith.constant 0 : i32
    %c0_i32_1 = arith.constant 0 : i32
    return %c0_i32, %c0_i32_0 : i32, i32
  }
  func.func @transform_5(%arg0: i32) -> (i32, i32, i32) {
    %c0_i32 = arith.constant 0 : i32
    %c0_i32_0 = arith.constant 0 : i32
    %c0_i32_1 = arith.constant 0 : i32
    %c0_i32_2 = arith.constant 0 : i32
    return %c0_i32, %c0_i32_0, %c0_i32_1 : i32, i32, i32
  }
  func.func @transform_6(%arg0: i32) -> (i32, i32) {
    %c0_i32 = arith.constant 0 : i32
    %c0_i32_0 = arith.constant 0 : i32
    %c0_i32_1 = arith.constant 0 : i32
    return %c0_i32, %c0_i32_0 : i32, i32
  }
  func.func @transform_7(%arg0: i32) -> (i32, i32) {
    %c0_i32 = arith.constant 0 : i32
    %c0_i32_0 = arith.constant 0 : i32
    %c0_i32_1 = arith.constant 0 : i32
    return %c0_i32, %c0_i32_0 : i32, i32
  }
  func.func @transform_8(%arg0: i32) -> (i32, i32) {
    %c0_i32 = arith.constant 0 : i32
    %c0_i32_0 = arith.constant 0 : i32
    %c0_i32_1 = arith.constant 0 : i32
    return %c0_i32, %c0_i32_0 : i32, i32
  }
  func.func @transform_9(%arg0: i32) -> (i32, i32) {
    %c0_i32 = arith.constant 0 : i32
    %c0_i32_0 = arith.constant 0 : i32
    %c0_i32_1 = arith.constant 0 : i32
    return %c0_i32, %c0_i32_0 : i32, i32
  }
  func.func @transform_10(%arg0: i32) -> (i32, i32) {
    %c0_i32 = arith.constant 0 : i32
    %c0_i32_0 = arith.constant 0 : i32
    %c0_i32_1 = arith.constant 0 : i32
    return %c0_i32, %c0_i32_0 : i32, i32
  }
  func.func @transform_11(%arg0: i32) -> (i32, i32, i32) {
    %c0_i32 = arith.constant 0 : i32
    %c0_i32_0 = arith.constant 0 : i32
    %c0_i32_1 = arith.constant 0 : i32
    return %arg0, %c0_i32, %c0_i32_0 : i32, i32, i32
  }
}

</mosaic_0001>

<llo_original>
// kernel: tpu_custom_call.1
$region0: #{tpu_custom_call.1}
  #allocation0 [shape = 'u32[]', space=smem, size = 0x4, offset = 0x4, fixed_abs, tag = 'smem constant byte address 0x4 - core index']
  #allocation1 [shape = 'u32[144,128]{1,0:T(1,128)}', space=vmem, size = 0x12000, scoped, tag = 'internal scratch']
  #allocation2 [shape = 'bf16[8,290]{1,0:T(8,128)(2,1)}', space=vmem, size = 0x1800, scoped, tag = 'scratch operand']
  %s0 = inlined_call_operand.vmem [shape: f32[2,32,256], index: 0, kind: input, shape index: {}]
  %s1 = inlined_call_operand.vmem [shape: bf16[9,256], index: 1, kind: input, shape index: {}]
  %s2 = inlined_call_operand.vmem [shape: bf16[8,32], index: 2, kind: input, shape index: {}]
  %s3 = inlined_call_operand.vmem [shape: f32[8,1], index: 3, kind: input, shape index: {}]
  %s4 = inlined_call_operand.vmem [shape: f32[8,1], index: 4, kind: input, shape index: {}]
  %s5 = inlined_call_operand.vmem [shape: bf16[9,8,8], index: 5, kind: input, shape index: {}]
  %s6 = inlined_call_operand.vmem [shape: f32[8,1], index: 6, kind: input, shape index: {}]
  %s7 = inlined_call_operand.vmem [shape: f32[8,1], index: 7, kind: input, shape index: {}]
  %s8 = inlined_call_operand.vmem [shape: bf16[32,8], index: 8, kind: input, shape index: {}]
  %s9 = inlined_call_operand.vmem [shape: f32[32,1], index: 9, kind: input, shape index: {}]
  %s10 = inlined_call_operand.vmem [shape: f32[32,1], index: 10, kind: input, shape index: {}]
  %s11 = inlined_call_operand.hbm [shape: f32[2,32,256], index: 11, kind: output, shape index: {}]
  %s12 = sld [smem:[#allocation0]]
  $region77: #{tpu_custom_call.1} parent=0
    _
  %s14 = ssub.s32 1, %s12
  %s15 = scalar_select 0, %s14, %s12
  $region1: #{tpu_custom_call.1} parent=0
    #allocation3 [shape = 'u8[65536]{0}', space=vmem, size = 0x10000, scoped, tag = 'output window, operand 0']
    #allocation4 [shape = 's32[2]{0}', space=sflag, size = 0x8, scoped, tag = 'scoped memory for tpu_custom_call.1']
    %16 = vsyncpa [#allocation4], 0
    %s17 = scalar_lea.sflag [#allocation4], 1
    %18 = vsyncpa %s17, 0
    loop: start=0, step=1, limit=4
    $region2: #{tpu_custom_call.1} parent=1 // loop_pre_header
      _
    $region3: #{tpu_custom_call.1} parent=1 // loop_header
      %s20 = sphi 0, %s24
      %p21 = scmp.ge.s32.totalorder %s20, 4
      %s30 = sphi 0, %s32
      %s33 = sphi 0, %s30
      %s34 = sphi 0, %s33
      %s50 = sphi 0, %s34
      %s54 = sphi 0, %s54
      %s56 = sphi 0, %s54
      %s57 = sphi 0, %s56
      %s71 = sphi 0, %s57
      %s75 = sphi 0, %s75
      %s77 = sphi 0, %s75
      %s78 = sphi 0, %s77
      %s92 = sphi 0, %s78
      %s96 = sphi 0, %s96
      %s98 = sphi 0, %s96
      %s99 = sphi 0, %s98
      %s113 = sphi 0, %s99
      %s117 = sphi 0, %s117
      %s119 = sphi 0, %s117
      %s120 = sphi 0, %s119
      %s134 = sphi 0, %s120
      %s138 = sphi 0, %s138
      %s140 = sphi 0, %s138
      %s141 = sphi 0, %s140
      %s155 = sphi 0, %s141
      %s159 = sphi 0, %s159
      %s161 = sphi 0, %s159
      %s162 = sphi 0, %s161
      %s176 = sphi 0, %s162
      %s180 = sphi 0, %s180
      %s182 = sphi 0, %s180
      %s183 = sphi 0, %s182
      %s197 = sphi 0, %s183
      %s201 = sphi 0, %s201
      %s203 = sphi 0, %s201
      %s204 = sphi 0, %s203
      %s218 = sphi 0, %s204
      %s222 = sphi 0, %s222
      %s224 = sphi 0, %s222
      %s225 = sphi 0, %s224
      %s239 = sphi 0, %s225
      %s243 = sphi 0, %s243
      %s245 = sphi 0, %s243
      %s246 = sphi 0, %s245
      %s260 = sphi 0, %s246
      %s266 = sphi 0, %s268
      %s269 = sphi 0, %s266
      %s270 = sphi 0, %s269
      %s286 = sphi 0, %s270
    $region4: #{tpu_custom_call.1} parent=1 // loop_header_branch
      %23 = sbr.rel (%p21) target = $region8
    $region5: #{tpu_custom_call.1} parent=1 // loop_body
      %s25 = ssub.s32 %s20, 1
      %s26 = ssub.s32 %s20, 2
      %s27 = sadd.s32 %s20, 1
      %s28 = ssub.s32 %s20, %s27
      %p29 = scmp.eq.s32.totalorder %s28, 0
      %s31 = sadd.s32 %s30, 1
      %s32 = scalar_select %p29, %s30, %s31
      %p35 = pneg %p29
      %p36 = scmp.eq.s32.totalorder %s20, 1
      %p37 = por %p35, %p36
      %p38 = scmp.ne.s32.totalorder %s30, %s33
      %p39 = scmp.eq.s32.totalorder %s20, 0
      %p40 = por %p38, %p39
      %p41 = scmp.ne.s32.totalorder %s30, %s33
      %p42 = scmp.eq.s32.totalorder %s25, 1
      %p43 = por %p41, %p42
      %p44 = scmp.ne.s32.totalorder %s33, %s34
      %p45 = scmp.eq.s32.totalorder %s25, 0
      %p46 = por %p44, %p45
      %p47 = scmp.ne.s32.totalorder %s33, %s34
      %p48 = scmp.eq.s32.totalorder %s26, 1
      %p49 = por %p47, %p48
      %p51 = scmp.ne.s32.totalorder %s34, %s50
      %p52 = scmp.eq.s32.totalorder %s26, 0
      %p53 = por %p51, %p52
      %s55 = sadd.s32 %s54, 1
      %p58 = scmp.eq.s32.totalorder %s20, 1
      %p59 = scmp.ne.s32.totalorder %s54, %s56
      %p60 = scmp.eq.s32.totalorder %s20, 0
      %p61 = por %p59, %p60
      %p62 = scmp.ne.s32.totalorder %s54, %s56
      %p63 = scmp.eq.s32.totalorder %s25, 1
      %p64 = por %p62, %p63
      %p65 = scmp.ne.s32.totalorder %s56, %s57
      %p66 = scmp.eq.s32.totalorder %s25, 0
      %p67 = por %p65, %p66
      %p68 = scmp.ne.s32.totalorder %s56, %s57
      %p69 = scmp.eq.s32.totalorder %s26, 1
      %p70 = por %p68, %p69
      %p72 = scmp.ne.s32.totalorder %s57, %s71
      %p73 = scmp.eq.s32.totalorder %s26, 0
      %p74 = por %p72, %p73
      %s76 = sadd.s32 %s75, 1
      %p79 = scmp.eq.s32.totalorder %s20, 1
      %p80 = scmp.ne.s32.totalorder %s75, %s77
      %p81 = scmp.eq.s32.totalorder %s20, 0
      %p82 = por %p80, %p81
      %p83 = scmp.ne.s32.totalorder %s75, %s77
      %p84 = scmp.eq.s32.totalorder %s25, 1
      %p85 = por %p83, %p84
      %p86 = scmp.ne.s32.totalorder %s77, %s78
      %p87 = scmp.eq.s32.totalorder %s25, 0
      %p88 = por %p86, %p87
      %p89 = scmp.ne.s32.totalorder %s77, %s78
      %p90 = scmp.eq.s32.totalorder %s26, 1
      %p91 = por %p89, %p90
      %p93 = scmp.ne.s32.totalorder %s78, %s92
      %p94 = scmp.eq.s32.totalorder %s26, 0
      %p95 = por %p93, %p94
      %s97 = sadd.s32 %s96, 1
      %p100 = scmp.eq.s32.totalorder %s20, 1
      %p101 = scmp.ne.s32.totalorder %s96, %s98
      %p102 = scmp.eq.s32.totalorder %s20, 0
      %p103 = por %p101, %p102
      %p104 = scmp.ne.s32.totalorder %s96, %s98
      %p105 = scmp.eq.s32.totalorder %s25, 1
      %p106 = por %p104, %p105
      %p107 = scmp.ne.s32.totalorder %s98, %s99
      %p108 = scmp.eq.s32.totalorder %s25, 0
      %p109 = por %p107, %p108
      %p110 = scmp.ne.s32.totalorder %s98, %s99
      %p111 = scmp.eq.s32.totalorder %s26, 1
      %p112 = por %p110, %p111
      %p114 = scmp.ne.s32.totalorder %s99, %s113
      %p115 = scmp.eq.s32.totalorder %s26, 0
      %p116 = por %p114, %p115
      %s118 = sadd.s32 %s117, 1
      %p121 = scmp.eq.s32.totalorder %s20, 1
      %p122 = scmp.ne.s32.totalorder %s117, %s119
      %p123 = scmp.eq.s32.totalorder %s20, 0
      %p124 = por %p122, %p123
      %p125 = scmp.ne.s32.totalorder %s117, %s119
      %p126 = scmp.eq.s32.totalorder %s25, 1
      %p127 = por %p125, %p126
      %p128 = scmp.ne.s32.totalorder %s119, %s120
      %p129 = scmp.eq.s32.totalorder %s25, 0
      %p130 = por %p128, %p129
      %p131 = scmp.ne.s32.totalorder %s119, %s120
      %p132 = scmp.eq.s32.totalorder %s26, 1
      %p133 = por %p131, %p132
      %p135 = scmp.ne.s32.totalorder %s120, %s134
      %p136 = scmp.eq.s32.totalorder %s26, 0
      %p137 = por %p135, %p136
      %s139 = sadd.s32 %s138, 1
      %p142 = scmp.eq.s32.totalorder %s20, 1
      %p143 = scmp.ne.s32.totalorder %s138, %s140
      %p144 = scmp.eq.s32.totalorder %s20, 0
      %p145 = por %p143, %p144
      %p146 = scmp.ne.s32.totalorder %s138, %s140
      %p147 = scmp.eq.s32.totalorder %s25, 1
      %p148 = por %p146, %p147
      %p149 = scmp.ne.s32.totalorder %s140, %s141
      %p150 = scmp.eq.s32.totalorder %s25, 0
      %p151 = por %p149, %p150
      %p152 = scmp.ne.s32.totalorder %s140, %s141
      %p153 = scmp.eq.s32.totalorder %s26, 1
      %p154 = por %p152, %p153
      %p156 = scmp.ne.s32.totalorder %s141, %s155
      %p157 = scmp.eq.s32.totalorder %s26, 0
      %p158 = por %p156, %p157
      %s160 = sadd.s32 %s159, 1
      %p163 = scmp.eq.s32.totalorder %s20, 1
      %p164 = scmp.ne.s32.totalorder %s159, %s161
      %p165 = scmp.eq.s32.totalorder %s20, 0
      %p166 = por %p164, %p165
      %p167 = scmp.ne.s32.totalorder %s159, %s161
      %p168 = scmp.eq.s32.totalorder %s25, 1
      %p169 = por %p167, %p168
      %p170 = scmp.ne.s32.totalorder %s161, %s162
      %p171 = scmp.eq.s32.totalorder %s25, 0
      %p172 = por %p170, %p171
      %p173 = scmp.ne.s32.totalorder %s161, %s162
      %p174 = scmp.eq.s32.totalorder %s26, 1
      %p175 = por %p173, %p174
      %p177 = scmp.ne.s32.totalorder %s162, %s176
      %p178 = scmp.eq.s32.totalorder %s26, 0
      %p179 = por %p177, %p178
      %s181 = sadd.s32 %s180, 1
      %p184 = scmp.eq.s32.totalorder %s20, 1
      %p185 = scmp.ne.s32.totalorder %s180, %s182
      %p186 = scmp.eq.s32.totalorder %s20, 0
      %p187 = por %p185, %p186
      %p188 = scmp.ne.s32.totalorder %s180, %s182
      %p189 = scmp.eq.s32.totalorder %s25, 1
      %p190 = por %p188, %p189
      %p191 = scmp.ne.s32.totalorder %s182, %s183
      %p192 = scmp.eq.s32.totalorder %s25, 0
      %p193 = por %p191, %p192
      %p194 = scmp.ne.s32.totalorder %s182, %s183
      %p195 = scmp.eq.s32.totalorder %s26, 1
      %p196 = por %p194, %p195
      %p198 = scmp.ne.s32.totalorder %s183, %s197
      %p199 = scmp.eq.s32.totalorder %s26, 0
      %p200 = por %p198, %p199
      %s202 = sadd.s32 %s201, 1
      %p205 = scmp.eq.s32.totalorder %s20, 1
      %p206 = scmp.ne.s32.totalorder %s201, %s203
      %p207 = scmp.eq.s32.totalorder %s20, 0
      %p208 = por %p206, %p207
      %p209 = scmp.ne.s32.totalorder %s201, %s203
      %p210 = scmp.eq.s32.totalorder %s25, 1
      %p211 = por %p209, %p210
      %p212 = scmp.ne.s32.totalorder %s203, %s204
      %p213 = scmp.eq.s32.totalorder %s25, 0
      %p214 = por %p212, %p213
      %p215 = scmp.ne.s32.totalorder %s203, %s204
      %p216 = scmp.eq.s32.totalorder %s26, 1
      %p217 = por %p215, %p216
      %p219 = scmp.ne.s32.totalorder %s204, %s218
      %p220 = scmp.eq.s32.totalorder %s26, 0
      %p221 = por %p219, %p220
      %s223 = sadd.s32 %s222, 1
      %p226 = scmp.eq.s32.totalorder %s20, 1
      %p227 = scmp.ne.s32.totalorder %s222, %s224
      %p228 = scmp.eq.s32.totalorder %s20, 0
      %p229 = por %p227, %p228
      %p230 = scmp.ne.s32.totalorder %s222, %s224
      %p231 = scmp.eq.s32.totalorder %s25, 1
      %p232 = por %p230, %p231
      %p233 = scmp.ne.s32.totalorder %s224, %s225
      %p234 = scmp.eq.s32.totalorder %s25, 0
      %p235 = por %p233, %p234
      %p236 = scmp.ne.s32.totalorder %s224, %s225
      %p237 = scmp.eq.s32.totalorder %s26, 1
      %p238 = por %p236, %p237
      %p240 = scmp.ne.s32.totalorder %s225, %s239
      %p241 = scmp.eq.s32.totalorder %s26, 0
      %p242 = por %p240, %p241
      %s244 = sadd.s32 %s243, 1
      %p247 = scmp.eq.s32.totalorder %s20, 1
      %p248 = scmp.ne.s32.totalorder %s243, %s245
      %p249 = scmp.eq.s32.totalorder %s20, 0
      %p250 = por %p248, %p249
      %p251 = scmp.ne.s32.totalorder %s243, %s245
      %p252 = scmp.eq.s32.totalorder %s25, 1
      %p253 = por %p251, %p252
      %p254 = scmp.ne.s32.totalorder %s245, %s246
      %p255 = scmp.eq.s32.totalorder %s25, 0
      %p256 = por %p254, %p255
      %p257 = scmp.ne.s32.totalorder %s245, %s246
      %p258 = scmp.eq.s32.totalorder %s26, 1
      %p259 = por %p257, %p258
      %p261 = scmp.ne.s32.totalorder %s246, %s260
      %p262 = scmp.eq.s32.totalorder %s26, 0
      %p263 = por %p261, %p262
      %s264 = ssub.s32 %s20, %s27
      %p265 = scmp.eq.s32.totalorder %s264, 0
      %s267 = sadd.s32 %s266, 1
      %s268 = scalar_select %p265, %s266, %s267
      %p271 = pneg %p265
      %p272 = scmp.eq.s32.totalorder %s20, 1
      %p273 = por %p271, %p272
      %p274 = scmp.ne.s32.totalorder %s266, %s269
      %p275 = scmp.eq.s32.totalorder %s20, 0
      %p276 = por %p274, %p275
      %p277 = scmp.ne.s32.totalorder %s266, %s269
      %p278 = scmp.eq.s32.totalorder %s25, 1
      %p279 = por %p277, %p278
      %p280 = scmp.ne.s32.totalorder %s269, %s270
      %p281 = scmp.eq.s32.totalorder %s25, 0
      %p282 = por %p280, %p281
      %p283 = scmp.ne.s32.totalorder %s269, %s270
      %p284 = scmp.eq.s32.totalorder %s26, 1
      %p285 = por %p283, %p284
      %p287 = scmp.ne.s32.totalorder %s270, %s286
      %p288 = scmp.eq.s32.totalorder %s26, 0
      %p289 = por %p287, %p288
      %p290 = scmp.le.s32.totalorder 1, %s20
      %p291 = scmp.lt.s32.totalorder %s20, 3
      %p292 = pnand %p290, %p291
      %p293 = pneg %p292
      // Predicated region
      $region9: #{tpu_custom_call.1} parent=5 // pred_check
        _
      $region10: #{tpu_custom_call.1} parent=5 // pred_check_branch
        %295 = sbr.rel (%p292) target = $region12
      $region11: #{tpu_custom_call.1} parent=5 // pred_region
        %s296 = ssub.s32 %s20, 1
        // Predicated region
        $region13: #{tpu_custom_call.1} parent=11 // pred_check
          %p297 = pneg %p67
        $region14: #{tpu_custom_call.1} parent=11 // pred_check_branch
          %299 = sbr.rel (%p297) target = $region16
        $region15: #{tpu_custom_call.1} parent=11 // pred_region
          _
        $region16: #{tpu_custom_call.1} parent=11 // pred_fallthru
          _
        // Predicated region
        $region17: #{tpu_custom_call.1} parent=11 // pred_check
          %p300 = pneg %p88
        $region18: #{tpu_custom_call.1} parent=11 // pred_check_branch
          %302 = sbr.rel (%p300) target = $region20
        $region19: #{tpu_custom_call.1} parent=11 // pred_region
          _
        $region20: #{tpu_custom_call.1} parent=11 // pred_fallthru
          _
        // Predicated region
        $region21: #{tpu_custom_call.1} parent=11 // pred_check
          %p303 = pneg %p109
        $region22: #{tpu_custom_call.1} parent=11 // pred_check_branch
          %305 = sbr.rel (%p303) target = $region24
        $region23: #{tpu_custom_call.1} parent=11 // pred_region
          _
        $region24: #{tpu_custom_call.1} parent=11 // pred_fallthru
          _
        // Predicated region
        $region25: #{tpu_custom_call.1} parent=11 // pred_check
          %p306 = pneg %p130
        $region26: #{tpu_custom_call.1} parent=11 // pred_check_branch
          %308 = sbr.rel (%p306) target = $region28
        $region27: #{tpu_custom_call.1} parent=11 // pred_region
          _
        $region28: #{tpu_custom_call.1} parent=11 // pred_fallthru
          _
        // Predicated region
        $region29: #{tpu_custom_call.1} parent=11 // pred_check
          %p309 = pneg %p151
        $region30: #{tpu_custom_call.1} parent=11 // pred_check_branch
          %311 = sbr.rel (%p309) target = $region32
        $region31: #{tpu_custom_call.1} parent=11 // pred_region
          _
        $region32: #{tpu_custom_call.1} parent=11 // pred_fallthru
          _
        // Predicated region
        $region33: #{tpu_custom_call.1} parent=11 // pred_check
          %p312 = pneg %p172
        $region34: #{tpu_custom_call.1} parent=11 // pred_check_branch
          %314 = sbr.rel (%p312) target = $region36
        $region35: #{tpu_custom_call.1} parent=11 // pred_region
          _
        $region36: #{tpu_custom_call.1} parent=11 // pred_fallthru
          _
        // Predicated region
        $region37: #{tpu_custom_call.1} parent=11 // pred_check
          %p315 = pneg %p193
        $region38: #{tpu_custom_call.1} parent=11 // pred_check_branch
          %317 = sbr.rel (%p315) target = $region40
        $region39: #{tpu_custom_call.1} parent=11 // pred_region
          _
        $region40: #{tpu_custom_call.1} parent=11 // pred_fallthru
          _
        // Predicated region
        $region41: #{tpu_custom_call.1} parent=11 // pred_check
          %p318 = pneg %p214
        $region42: #{tpu_custom_call.1} parent=11 // pred_check_branch
          %320 = sbr.rel (%p318) target = $region44
        $region43: #{tpu_custom_call.1} parent=11 // pred_region
          _
        $region44: #{tpu_custom_call.1} parent=11 // pred_fallthru
          _
        // Predicated region
        $region45: #{tpu_custom_call.1} parent=11 // pred_check
          %p321 = pneg %p235
        $region46: #{tpu_custom_call.1} parent=11 // pred_check_branch
          %323 = sbr.rel (%p321) target = $region48
        $region47: #{tpu_custom_call.1} parent=11 // pred_region
          _
        $region48: #{tpu_custom_call.1} parent=11 // pred_fallthru
          _
        // Predicated region
        $region49: #{tpu_custom_call.1} parent=11 // pred_check
          %p324 = pneg %p256
        $region50: #{tpu_custom_call.1} parent=11 // pred_check_branch
          %326 = sbr.rel (%p324) target = $region52
        $region51: #{tpu_custom_call.1} parent=11 // pred_region
          _
        $region52: #{tpu_custom_call.1} parent=11 // pred_fallthru
          _
      $region12: #{tpu_custom_call.1} parent=5 // pred_fallthru
        _
      %p327 = scmp.lt.s32.totalorder %s20, 2
      // Predicated region
      $region53: #{tpu_custom_call.1} parent=5 // pred_check
        %p328 = pneg %p327
      $region54: #{tpu_custom_call.1} parent=5 // pred_check_branch
        %330 = sbr.rel (%p328) target = $region56
      $region55: #{tpu_custom_call.1} parent=5 // pred_region
        // Predicated region
        $region57: #{tpu_custom_call.1} parent=55 // pred_check
          %p331 = pneg %p40
        $region58: #{tpu_custom_call.1} parent=55 // pred_check_branch
          %333 = sbr.rel (%p331) target = $region60
        $region59: #{tpu_custom_call.1} parent=55 // pred_region
          %p334 = scmp.lt.s32.totalorder %s20, 1
          %s335 = scalar_select %p334, %s20, 1
          %s336 = smul.addr %s335, 8
          %s337 = smul.addr %s336, 8
          %s338 = scalar_lea.vmem %s0, %s337
        $region60: #{tpu_custom_call.1} parent=55 // pred_fallthru
          _
      $region56: #{tpu_custom_call.1} parent=5 // pred_fallthru
        _
      %p339 = scmp.le.s32.totalorder 1, %s20
      %p340 = scmp.lt.s32.totalorder %s20, 3
      %p341 = pnand %p339, %p340
      %p342 = pneg %p341
      // Predicated region
      $region61: #{tpu_custom_call.1} parent=5 // pred_check
        _
      $region62: #{tpu_custom_call.1} parent=5 // pred_check_branch
        %344 = sbr.rel (%p341) target = $region64
      $region63: #{tpu_custom_call.1} parent=5 // pred_region
        %s345 = ssub.s32 %s20, 1
        %p346 = scmp.lt.s32.totalorder %s25, 1
        %s347 = scalar_select %p346, %s25, 1
        %s348 = smul.addr %s347, 8
        %s349 = smul.addr %s348, 8
        %s350 = scalar_lea.vmem %s0, %s349
        %p351 = pneg %p46
        %p352 = pneg %p43
        %p353 = pneg %p67
        %p354 = pneg %p64
        %p355 = pneg %p88
        %p356 = pneg %p85
        %p357 = pneg %p109
        %p358 = pneg %p106
        %p359 = pneg %p130
        %p360 = pneg %p127
        %p361 = pneg %p151
        %p362 = pneg %p148
        %p363 = pneg %p172
        %p364 = pneg %p169
        %p365 = pneg %p193
        %p366 = pneg %p190
        %p367 = pneg %p214
        %p368 = pneg %p211
        %p369 = pneg %p235
        %p370 = pneg %p232
        %p371 = pneg %p256
        %p372 = pneg %p253
        %p373 = pneg %p282
        %p374 = pneg %p279
        %s375 = sand.u32 %s269, 1
        %s376 = scalar_lea.sflag [#allocation4], %s375
        %s377 = sand.u32 %s269, 1
        %s378 = smul.addr %s377, 64
        %s379 = scalar_lea.vmem [#allocation3], %s378
        %p380 = scmp.lt.s32.totalorder %s25, 1
        %s381 = scalar_select %p380, %s25, 1
        %s382 = smul.addr %s381, 8
        %s383 = smul.addr %s382, 8
        %s384 = scalar_lea.vmem %s0, %s383
        %v386 = vld [vmem:[%s384] sm:$0xff]
        %v387 = vld [vmem:[%s384 + $0x8] sm:$0xff]
        %v388 = vld [vmem:[%s384 + $0x10] sm:$0xff]
        %v389 = vld [vmem:[%s384 + $0x18] sm:$0xff]
        %v390 = vld [vmem:[%s384 + $0x20] sm:$0xff]
        %v391 = vld [vmem:[%s384 + $0x28] sm:$0xff]
        %v392 = vld [vmem:[%s384 + $0x30] sm:$0xff]
        %v393 = vld [vmem:[%s384 + $0x38] sm:$0xff]
        %v394 = vpack.c.bf16 %v388, %v386
        %v395 = vpack.c.bf16 %v389, %v387
        %v396 = vpack.c.bf16 %v392, %v390
        %v397 = vpack.c.bf16 %v393, %v391
        %v398 = vld [vmem:[%s2] sm:$0xf]
        %vm399 = vcmask 261120
        %v401 = vsel %vm399, %v398, 0
        %403 = vmatprep.subr.bf16.mxu0 %v395
        %404 = vmatpush1.bf16.msra.mxu0 %v394
        %405 = vmatprep.subr.bf16.mxu0 %v397
        %406 = vmatpush1.bf16.msra.mxu0 %v396
        %407 = vmatprep.subr.bf16.mxu0 0
        %408 = vmatpush1.bf16.msra.mxu0 0
        %409 = vmatprep.subr.bf16.mxu0 0
        %410 = vmatpush1.bf16.msra.mxu0 0
        %411 = vmatprep.subr.bf16.mxu0 0
        %412 = vmatpush1.bf16.msra.mxu0 0
        %413 = vmatprep.subr.bf16.mxu0 0
        %414 = vmatpush1.bf16.msra.mxu0 0
        %415 = vmatprep.subr.bf16.mxu0 0
        %416 = vmatpush1.bf16.msra.mxu0 0
        %417 = vmatprep.subr.bf16.mxu0 0
        %418 = vmatpush1.bf16.msra.mxu0 0
        %419 = vmatprep.subr.bf16.mxu0 0
        %420 = vmatpush1.bf16.msra.mxu0 0
        %421 = vmatprep.subr.bf16.mxu0 0
        %422 = vmatpush1.bf16.msra.mxu0 0
        %423 = vmatprep.subr.bf16.mxu0 0
        %424 = vmatpush1.bf16.msra.mxu0 0
        %425 = vmatprep.subr.bf16.mxu0 0
        %426 = vmatpush1.bf16.msra.mxu0 0
        %427 = vmatprep.subr.bf16.mxu0 0
        %428 = vmatpush1.bf16.msra.mxu0 0
        %429 = vmatprep.subr.bf16.mxu0 0
        %430 = vmatpush1.bf16.msra.mxu0 0
        %431 = vmatprep.subr.bf16.mxu0 0
        %432 = vmatpush1.bf16.msra.mxu0 0
        %433 = vmatprep.subr.bf16.mxu0 0
        %434 = vmatpush1.bf16.msra.mxu0 0
        %435 = vmatprep.mubr.bf16.mxu0 0
        %436 = vmatmul.mubr.bf16.gmra.mrb[0].mxu0 %v401
        %v437 = vpop.f32.mrb[0].mxu0
        %v438 = vadd.f32 0.0, %v437
        %v439 = vpop.f32.mrb[0].mxu0
        %v440 = vadd.f32 0.0, %v439
        %v441 = vpop.f32.mrb[0].mxu0
        %v442 = vpop.f32.mrb[0].mxu0
        %443 = vdwg.mxu0
        %v444 = vld [vmem:[%s3] sm:$0xff]
        %446 = vset.pattern.permute.xlu0 0
        %447 = vperm.xlu0 %446, %v444
        %v448 = vpop.permute.xlu0 %447
        %v450 = vmul.f32 %v438, %v448
        %v451 = vmul.f32 %v440, %v448
        %v452 = vld [vmem:[%s4] sm:$0xff]
        %454 = vset.pattern.permute.xlu0 0
        %455 = vperm.xlu0 %454, %v452
        %v456 = vpop.permute.xlu0 %455
        %v458 = vadd.f32 %v450, %v456
        %v459 = vadd.f32 %v451, %v456
        %v460 = vmax.f32 %v458, 0.0
        %v461 = vmax.f32 %v459, 0.0
        %vm462 = vcmask 134144
        %463 = vst.msk [vmem:[#allocation2] sm:$0xf] %vm462, 0
        %vm464 = vcmask 273544
        %465 = vst.msk [vmem:[#allocation2 + $0x8] sm:$0xf] %vm464, 0
        %v466 = vpack.c.bf16 %v460, %v460
        %v467 = vpack.c.bf16 %v461, %v461
        %v470 = vunpack.c.l.b16 %v466
        %v471 = vunpack.c.l.b16 %v467
        %v472 = vpack.c.b16 %v471, %v470
        %473 = vrot.lane.b32.xlu0 %v472, 17
        %v474 = vpop.permute.xlu0 %473
        %v475 = vrot.slane %v474, 4
        %vm476 = vcmask 138240
        %v477 = vsel %vm476, %v475, %v474
        %vm480 = vcmask 1043592
        %vm481 = vcmask 1047556
        %vm482 = vmor %vm481, %vm480
        %483 = vst.msk [vmem:[#allocation2] sm:$0xff] %vm482, %v477
        %484 = vst.msk [vmem:[#allocation2 + $0x8] sm:$0xf] %vm462, %v475
        %v485 = vld [vmem:[#allocation2] sm:$0xff]
        %v486 = vld [vmem:[%s1] sm:$0x11]
        %v488 = vunpack.c.l.b16 %v486
        %v489 = vunpack.c.h.b16 %v486
        %v490 = vpack.c.b16 %v488, %v488
        %v491 = vpack.c.b16 %v489, %v489
        %v493 = vpack.i.b16 %v490, %v490
        %v495 = vlaneseq
        %v496 = vshrl.u32 %v495, 7
        %v497 = vsub.s32 0, %v496
        %v498 = vrot.slane %v493, %v497
        %v500 = vpack.i.b16 %v491, %v491
        %v502 = vlaneseq
        %v503 = vshrl.u32 %v502, 7
        %v504 = vsub.s32 0, %v503
        %v505 = vrot.slane %v500, %v504
        %v508 = vunpack.c.l.b16 %v498
        %v509 = vunpack.c.l.b16 %v505
        %v510 = vpack.c.b16 %v509, %v508
        %v512 = vmul.bf16 %v485, %v510
        %v513 = vld [vmem:[%s5] sm:$0xf]
        %v514 = vld [vmem:[#allocation2 + $0x8] sm:$0xf]
        %v515 = vshrl.u32 %v490, 16
        %v516 = vpack.i.b16 %v515, %v515
        %v518 = vlaneseq
        %v519 = vshrl.u32 %v518, 7
        %v520 = vsub.s32 0, %v519
        %v521 = vrot.slane %v516, %v520
        %v522 = vshrl.u32 %v491, 16
        %v523 = vpack.i.b16 %v522, %v522
        %v525 = vlaneseq
        %v526 = vshrl.u32 %v525, 7
        %v527 = vsub.s32 0, %v526
        %v528 = vrot.slane %v523, %v527
        %v531 = vunpack.c.l.b16 %v521
        %v532 = vunpack.c.l.b16 %v528
        %v533 = vpack.c.b16 %v532, %v531
        %534 = vrot.lane.b32.xlu0 %v533, 1
        %v535 = vpop.permute.xlu0 %534
        %v536 = vrot.slane %v535, 4
        %vm537 = vcmask 7168
        %v538 = vsel %vm537, %v536, %v535
        %v541 = vmul.bf16 %v485, %v538
        %v542 = vmul.bf16 %v514, %v536
        %s543 = scalar_lea.vmem %s5, 4
        %v544 = vld [vmem:[%s543] sm:$0xf]
        %v547 = vunpack.c.l.b16 %v541
        %v548 = vunpack.c.h.b16 %v541
        %v549 = vunpack.c.l.b16 %v542
        %v550 = vpack.c.b16 %v547, %v547
        %v551 = vpack.c.b16 %v548, %v548
        %v552 = vpack.c.b16 %v549, %v549
        %553 = vrot.lane.b32.xlu0 %v550, 127
        %v554 = vpop.permute.xlu0 %553
        %555 = vrot.lane.b32.xlu0 %v551, 127
        %v556 = vpop.permute.xlu0 %555
        %557 = vrot.lane.b32.xlu0 %v552, 127
        %v558 = vpop.permute.xlu0 %557
        %vm559 = vcmask 1039360
        %v560 = vsel %vm559, %v554, %v556
        %v561 = vsel %vm559, %v556, %v558
        %vm562 = vcmask 64512
        %v564 = vsel %vm562, %v544, 0
        %vm566 = vcmask 1043456
        %v568 = vsel %vm566, %v560, 0
        %v571 = vsel %vm566, %v561, 0
        %573 = vmatprep.subr.bf16.mxu0 %v571
        %574 = vmatpush1.bf16.msra.mxu0 %v568
        %575 = vmatprep.subr.bf16.mxu0 0
        %576 = vmatpush1.bf16.msra.mxu0 0
        %577 = vmatprep.subr.bf16.mxu0 0
        %578 = vmatpush1.bf16.msra.mxu0 0
        %579 = vmatprep.subr.bf16.mxu0 0
        %580 = vmatpush1.bf16.msra.mxu0 0
        %581 = vmatprep.subr.bf16.mxu0 0
        %582 = vmatpush1.bf16.msra.mxu0 0
        %583 = vmatprep.subr.bf16.mxu0 0
        %584 = vmatpush1.bf16.msra.mxu0 0
        %585 = vmatprep.subr.bf16.mxu0 0
        %586 = vmatpush1.bf16.msra.mxu0 0
        %587 = vmatprep.subr.bf16.mxu0 0
        %588 = vmatpush1.bf16.msra.mxu0 0
        %589 = vmatprep.subr.bf16.mxu0 0
        %590 = vmatpush1.bf16.msra.mxu0 0
        %591 = vmatprep.subr.bf16.mxu0 0
        %592 = vmatpush1.bf16.msra.mxu0 0
        %593 = vmatprep.subr.bf16.mxu0 0
        %594 = vmatpush1.bf16.msra.mxu0 0
        %595 = vmatprep.subr.bf16.mxu0 0
        %596 = vmatpush1.bf16.msra.mxu0 0
        %597 = vmatprep.subr.bf16.mxu0 0
        %598 = vmatpush1.bf16.msra.mxu0 0
        %599 = vmatprep.subr.bf16.mxu0 0
        %600 = vmatpush1.bf16.msra.mxu0 0
        %601 = vmatprep.subr.bf16.mxu0 0
        %602 = vmatpush1.bf16.msra.mxu0 0
        %603 = vmatprep.subr.bf16.mxu0 0
        %604 = vmatpush1.bf16.msra.mxu0 0
        %605 = vmatprep.mubr.bf16.mxu0 0
        %606 = vmatmul.mubr.bf16.gmra.mrb[0].mxu0 %v564
        %v607 = vpop.f32.mrb[0].mxu0
        %v608 = vadd.f32 0.0, %v607
        %v609 = vpop.f32.mrb[0].mxu0
        %v610 = vadd.f32 0.0, %v609
        %v611 = vpop.f32.mrb[0].mxu0
        %v612 = vpop.f32.mrb[0].mxu0
        %613 = vdwg.mxu0
        %v615 = vunpack.c.l.b16 %v512
        %v616 = vunpack.c.h.b16 %v512
        %v617 = vpack.c.b16 %v615, %v615
        %v618 = vpack.c.b16 %v616, %v616
        %v620 = vsel %vm562, %v513, 0
        %v623 = vsel %vm566, %v617, 0
        %v626 = vsel %vm566, %v618, 0
        %628 = vmatprep.subr.bf16.mxu0 %v626
        %629 = vmatpush1.bf16.msra.mxu0 %v623
        %630 = vmatprep.subr.bf16.mxu0 0
        %631 = vmatpush1.bf16.msra.mxu0 0
        %632 = vmatprep.subr.bf16.mxu0 0
        %633 = vmatpush1.bf16.msra.mxu0 0
        %634 = vmatprep.subr.bf16.mxu0 0
        %635 = vmatpush1.bf16.msra.mxu0 0
        %636 = vmatprep.subr.bf16.mxu0 0
        %637 = vmatpush1.bf16.msra.mxu0 0
        %638 = vmatprep.subr.bf16.mxu0 0
        %639 = vmatpush1.bf16.msra.mxu0 0
        %640 = vmatprep.subr.bf16.mxu0 0
        %641 = vmatpush1.bf16.msra.mxu0 0
        %642 = vmatprep.subr.bf16.mxu0 0
        %643 = vmatpush1.bf16.msra.mxu0 0
        %644 = vmatprep.subr.bf16.mxu0 0
        %645 = vmatpush1.bf16.msra.mxu0 0
        %646 = vmatprep.subr.bf16.mxu0 0
        %647 = vmatpush1.bf16.msra.mxu0 0
        %648 = vmatprep.subr.bf16.mxu0 0
        %649 = vmatpush1.bf16.msra.mxu0 0
        %650 = vmatprep.subr.bf16.mxu0 0
        %651 = vmatpush1.bf16.msra.mxu0 0
        %652 = vmatprep.subr.bf16.mxu0 0
        %653 = vmatpush1.bf16.msra.mxu0 0
        %654 = vmatprep.subr.bf16.mxu0 0
        %655 = vmatpush1.bf16.msra.mxu0 0
        %656 = vmatprep.subr.bf16.mxu0 0
        %657 = vmatpush1.bf16.msra.mxu0 0
        %658 = vmatprep.subr.bf16.mxu0 0
        %659 = vmatpush1.bf16.msra.mxu0 0
        %660 = vmatprep.mubr.bf16.mxu0 0
        %661 = vmatmul.mubr.bf16.gmra.mrb[0].mxu0 %v620
        %v662 = vpop.f32.mrb[0].mxu0
        %v663 = vadd.f32 %v608, %v662
        %v664 = vpop.f32.mrb[0].mxu0
        %v665 = vadd.f32 %v610, %v664
        %v666 = vpop.f32.mrb[0].mxu0
        %v667 = vpop.f32.mrb[0].mxu0
        %668 = vdwg.mxu0
        %v669 = vld [vmem:[%s1] sm:$0x22]
        %v671 = vunpack.c.l.b16 %v669
        %v672 = vunpack.c.h.b16 %v669
        %v673 = vpack.c.b16 %v671, %v671
        %v674 = vpack.c.b16 %v672, %v672
        %v676 = vpack.i.b16 %v673, %v673
        %v678 = vlaneseq
        %v679 = vshrl.u32 %v678, 7
        %v680 = vsub.s32 1, %v679
        %v681 = vrot.slane %v676, %v680
        %v683 = vpack.i.b16 %v674, %v674
        %v685 = vlaneseq
        %v686 = vshrl.u32 %v685, 7
        %v687 = vsub.s32 1, %v686
        %v688 = vrot.slane %v683, %v687
        %v691 = vunpack.c.l.b16 %v681
        %v692 = vunpack.c.l.b16 %v688
        %v693 = vpack.c.b16 %v692, %v691
        %694 = vrot.lane.b32.xlu0 %v693, 2
        %v695 = vpop.permute.xlu0 %694
        %v696 = vrot.slane %v695, 4
        %vm697 = vcmask 15360
        %v698 = vsel %vm697, %v696, %v695
        %v701 = vmul.bf16 %v485, %v698
        %v702 = vmul.bf16 %v514, %v696
        %s703 = scalar_lea.vmem %s5, 8
        %v704 = vld [vmem:[%s703] sm:$0xf]
        %v707 = vunpack.c.l.b16 %v701
        %v708 = vunpack.c.h.b16 %v701
        %v709 = vunpack.c.l.b16 %v702
        %v710 = vpack.c.b16 %v707, %v707
        %v711 = vpack.c.b16 %v708, %v708
        %v712 = vpack.c.b16 %v709, %v709
        %713 = vrot.lane.b32.xlu0 %v710, 126
        %v714 = vpop.permute.xlu0 %713
        %715 = vrot.lane.b32.xlu0 %v711, 126
        %v716 = vpop.permute.xlu0 %715
        %717 = vrot.lane.b32.xlu0 %v712, 126
        %v718 = vpop.permute.xlu0 %717
        %vm719 = vcmask 1031168
        %v720 = vsel %vm719, %v714, %v716
        %v721 = vsel %vm719, %v716, %v718
        %v723 = vsel %vm562, %v704, 0
        %v726 = vsel %vm566, %v720, 0
        %v729 = vsel %vm566, %v721, 0
        %731 = vmatprep.subr.bf16.mxu0 %v729
        %732 = vmatpush1.bf16.msra.mxu0 %v726
        %733 = vmatprep.subr.bf16.mxu0 0
        %734 = vmatpush1.bf16.msra.mxu0 0
        %735 = vmatprep.subr.bf16.mxu0 0
        %736 = vmatpush1.bf16.msra.mxu0 0
        %737 = vmatprep.subr.bf16.mxu0 0
        %738 = vmatpush1.bf16.msra.mxu0 0
        %739 = vmatprep.subr.bf16.mxu0 0
        %740 = vmatpush1.bf16.msra.mxu0 0
        %741 = vmatprep.subr.bf16.mxu0 0
        %742 = vmatpush1.bf16.msra.mxu0 0
        %743 = vmatprep.subr.bf16.mxu0 0
        %744 = vmatpush1.bf16.msra.mxu0 0
        %745 = vmatprep.subr.bf16.mxu0 0
        %746 = vmatpush1.bf16.msra.mxu0 0
        %747 = vmatprep.subr.bf16.mxu0 0
        %748 = vmatpush1.bf16.msra.mxu0 0
        %749 = vmatprep.subr.bf16.mxu0 0
        %750 = vmatpush1.bf16.msra.mxu0 0
        %751 = vmatprep.subr.bf16.mxu0 0
        %752 = vmatpush1.bf16.msra.mxu0 0
        %753 = vmatprep.subr.bf16.mxu0 0
        %754 = vmatpush1.bf16.msra.mxu0 0
        %755 = vmatprep.subr.bf16.mxu0 0
        %756 = vmatpush1.bf16.msra.mxu0 0
        %757 = vmatprep.subr.bf16.mxu0 0
        %758 = vmatpush1.bf16.msra.mxu0 0
        %759 = vmatprep.subr.bf16.mxu0 0
        %760 = vmatpush1.bf16.msra.mxu0 0
        %761 = vmatprep.subr.bf16.mxu0 0
        %762 = vmatpush1.bf16.msra.mxu0 0
        %763 = vmatprep.mubr.bf16.mxu0 0
        %764 = vmatmul.mubr.bf16.gmra.mrb[0].mxu0 %v723
        %v765 = vpop.f32.mrb[0].mxu0
        %v766 = vadd.f32 0.0, %v765
        %v767 = vpop.f32.mrb[0].mxu0
        %v768 = vadd.f32 0.0, %v767
        %v769 = vpop.f32.mrb[0].mxu0
        %v770 = vpop.f32.mrb[0].mxu0
        %771 = vdwg.mxu0
        %v772 = vadd.f32 %v663, %v766
        %v773 = vadd.f32 %v665, %v768
        %v774 = vshrl.u32 %v673, 16
        %v775 = vpack.i.b16 %v774, %v774
        %v777 = vlaneseq
        %v778 = vshrl.u32 %v777, 7
        %v779 = vsub.s32 1, %v778
        %v780 = vrot.slane %v775, %v779
        %v781 = vshrl.u32 %v674, 16
        %v782 = vpack.i.b16 %v781, %v781
        %v784 = vlaneseq
        %v785 = vshrl.u32 %v784, 7
        %v786 = vsub.s32 1, %v785
        %v787 = vrot.slane %v782, %v786
        %v790 = vunpack.c.l.b16 %v780
        %v791 = vunpack.c.l.b16 %v787
        %v792 = vpack.c.b16 %v791, %v790
        %793 = vrot.lane.b32.xlu0 %v792, 16
        %v794 = vpop.permute.xlu0 %793
        %v795 = vrot.slane %v794, 4
        %vm796 = vcmask 130048
        %v797 = vsel %vm796, %v795, %v794
        %v800 = vmul.bf16 %v485, %v797
        %v801 = vmul.bf16 %v514, %v795
        %s802 = scalar_lea.vmem %s5, 12
        %v803 = vld [vmem:[%s802] sm:$0xf]
        %v806 = vunpack.c.l.b16 %v800
        %v807 = vunpack.c.h.b16 %v800
        %v808 = vunpack.c.l.b16 %v801
        %v809 = vpack.c.b16 %v806, %v806
        %v810 = vpack.c.b16 %v807, %v807
        %v811 = vpack.c.b16 %v808, %v808
        %812 = vrot.lane.b32.xlu0 %v809, 112
        %v813 = vpop.permute.xlu0 %812
        %814 = vrot.lane.b32.xlu0 %v810, 112
        %v815 = vpop.permute.xlu0 %814
        %816 = vrot.lane.b32.xlu0 %v811, 112
        %v817 = vpop.permute.xlu0 %816
        %vm818 = vcmask 916480
        %v819 = vsel %vm818, %v813, %v815
        %v820 = vsel %vm818, %v815, %v817
        %v822 = vsel %vm562, %v803, 0
        %v825 = vsel %vm566, %v819, 0
        %v828 = vsel %vm566, %v820, 0
        %830 = vmatprep.subr.bf16.mxu0 %v828
        %831 = vmatpush1.bf16.msra.mxu0 %v825
        %832 = vmatprep.subr.bf16.mxu0 0
        %833 = vmatpush1.bf16.msra.mxu0 0
        %834 = vmatprep.subr.bf16.mxu0 0
        %835 = vmatpush1.bf16.msra.mxu0 0
        %836 = vmatprep.subr.bf16.mxu0 0
        %837 = vmatpush1.bf16.msra.mxu0 0
        %838 = vmatprep.subr.bf16.mxu0 0
        %839 = vmatpush1.bf16.msra.mxu0 0
        %840 = vmatprep.subr.bf16.mxu0 0
        %841 = vmatpush1.bf16.msra.mxu0 0
        %842 = vmatprep.subr.bf16.mxu0 0
        %843 = vmatpush1.bf16.msra.mxu0 0
        %844 = vmatprep.subr.bf16.mxu0 0
        %845 = vmatpush1.bf16.msra.mxu0 0
        %846 = vmatprep.subr.bf16.mxu0 0
        %847 = vmatpush1.bf16.msra.mxu0 0
        %848 = vmatprep.subr.bf16.mxu0 0
        %849 = vmatpush1.bf16.msra.mxu0 0
        %850 = vmatprep.subr.bf16.mxu0 0
        %851 = vmatpush1.bf16.msra.mxu0 0
        %852 = vmatprep.subr.bf16.mxu0 0
        %853 = vmatpush1.bf16.msra.mxu0 0
        %854 = vmatprep.subr.bf16.mxu0 0
        %855 = vmatpush1.bf16.msra.mxu0 0
        %856 = vmatprep.subr.bf16.mxu0 0
        %857 = vmatpush1.bf16.msra.mxu0 0
        %858 = vmatprep.subr.bf16.mxu0 0
        %859 = vmatpush1.bf16.msra.mxu0 0
        %860 = vmatprep.subr.bf16.mxu0 0
        %861 = vmatpush1.bf16.msra.mxu0 0
        %862 = vmatprep.mubr.bf16.mxu0 0
        %863 = vmatmul.mubr.bf16.gmra.mrb[0].mxu0 %v822
        %v864 = vpop.f32.mrb[0].mxu0
        %v865 = vadd.f32 0.0, %v864
        %v866 = vpop.f32.mrb[0].mxu0
        %v867 = vadd.f32 0.0, %v866
        %v868 = vpop.f32.mrb[0].mxu0
        %v869 = vpop.f32.mrb[0].mxu0
        %870 = vdwg.mxu0
        %v871 = vadd.f32 %v772, %v865
        %v872 = vadd.f32 %v773, %v867
        %v873 = vld [vmem:[%s1] sm:$0x44]
        %v875 = vunpack.c.l.b16 %v873
        %v876 = vunpack.c.h.b16 %v873
        %v877 = vpack.c.b16 %v875, %v875
        %v878 = vpack.c.b16 %v876, %v876
        %v880 = vpack.i.b16 %v877, %v877
        %v882 = vlaneseq
        %v883 = vshrl.u32 %v882, 7
        %v884 = vsub.s32 2, %v883
        %v885 = vrot.slane %v880, %v884
        %v887 = vpack.i.b16 %v878, %v878
        %v889 = vlaneseq
        %v890 = vshrl.u32 %v889, 7
        %v891 = vsub.s32 2, %v890
        %v892 = vrot.slane %v887, %v891
        %v895 = vunpack.c.l.b16 %v885
        %v896 = vunpack.c.l.b16 %v892
        %v897 = vpack.c.b16 %v896, %v895
        %898 = vrot.lane.b32.xlu0 %v897, 17
        %v899 = vpop.permute.xlu0 %898
        %v900 = vrot.slane %v899, 4
        %v901 = vsel %vm476, %v900, %v899
        %v904 = vmul.bf16 %v485, %v901
        %v905 = vmul.bf16 %v514, %v900
        %s906 = scalar_lea.vmem %s5, 16
        %v907 = vld [vmem:[%s906] sm:$0xf]
        %v910 = vunpack.c.l.b16 %v904
        %v911 = vunpack.c.h.b16 %v904
        %v912 = vunpack.c.l.b16 %v905
        %v913 = vpack.c.b16 %v910, %v910
        %v914 = vpack.c.b16 %v911, %v911
        %v915 = vpack.c.b16 %v912, %v912
        %916 = vrot.lane.b32.xlu0 %v913, 111
        %v917 = vpop.permute.xlu0 %916
        %918 = vrot.lane.b32.xlu0 %v914, 111
        %v919 = vpop.permute.xlu0 %918
        %920 = vrot.lane.b32.xlu0 %v915, 111
        %v921 = vpop.permute.xlu0 %920
        %vm922 = vcmask 908288
        %v923 = vsel %vm922, %v917, %v919
        %v924 = vsel %vm922, %v919, %v921
        %v926 = vsel %vm562, %v907, 0
        %v929 = vsel %vm566, %v923, 0
        %v932 = vsel %vm566, %v924, 0
        %934 = vmatprep.subr.bf16.mxu0 %v932
        %935 = vmatpush1.bf16.msra.mxu0 %v929
        %936 = vmatprep.subr.bf16.mxu0 0
        %937 = vmatpush1.bf16.msra.mxu0 0
        %938 = vmatprep.subr.bf16.mxu0 0
        %939 = vmatpush1.bf16.msra.mxu0 0
        %940 = vmatprep.subr.bf16.mxu0 0
        %941 = vmatpush1.bf16.msra.mxu0 0
        %942 = vmatprep.subr.bf16.mxu0 0
        %943 = vmatpush1.bf16.msra.mxu0 0
        %944 = vmatprep.subr.bf16.mxu0 0
        %945 = vmatpush1.bf16.msra.mxu0 0
        %946 = vmatprep.subr.bf16.mxu0 0
        %947 = vmatpush1.bf16.msra.mxu0 0
        %948 = vmatprep.subr.bf16.mxu0 0
        %949 = vmatpush1.bf16.msra.mxu0 0
        %950 = vmatprep.subr.bf16.mxu0 0
        %951 = vmatpush1.bf16.msra.mxu0 0
        %952 = vmatprep.subr.bf16.mxu0 0
        %953 = vmatpush1.bf16.msra.mxu0 0
        %954 = vmatprep.subr.bf16.mxu0 0
        %955 = vmatpush1.bf16.msra.mxu0 0
        %956 = vmatprep.subr.bf16.mxu0 0
        %957 = vmatpush1.bf16.msra.mxu0 0
        %958 = vmatprep.subr.bf16.mxu0 0
        %959 = vmatpush1.bf16.msra.mxu0 0
        %960 = vmatprep.subr.bf16.mxu0 0
        %961 = vmatpush1.bf16.msra.mxu0 0
        %962 = vmatprep.subr.bf16.mxu0 0
        %963 = vmatpush1.bf16.msra.mxu0 0
        %964 = vmatprep.subr.bf16.mxu0 0
        %965 = vmatpush1.bf16.msra.mxu0 0
        %966 = vmatprep.mubr.bf16.mxu0 0
        %967 = vmatmul.mubr.bf16.gmra.mrb[0].mxu0 %v926
        %v968 = vpop.f32.mrb[0].mxu0
        %v969 = vadd.f32 0.0, %v968
        %v970 = vpop.f32.mrb[0].mxu0
        %v971 = vadd.f32 0.0, %v970
        %v972 = vpop.f32.mrb[0].mxu0
        %v973 = vpop.f32.mrb[0].mxu0
        %974 = vdwg.mxu0
        %v975 = vadd.f32 %v871, %v969
        %v976 = vadd.f32 %v872, %v971
        %v977 = vshrl.u32 %v877, 16
        %v978 = vpack.i.b16 %v977, %v977
        %v980 = vlaneseq
        %v981 = vshrl.u32 %v980, 7
        %v982 = vsub.s32 2, %v981
        %v983 = vrot.slane %v978, %v982
        %v984 = vshrl.u32 %v878, 16
        %v985 = vpack.i.b16 %v984, %v984
        %v987 = vlaneseq
        %v988 = vshrl.u32 %v987, 7
        %v989 = vsub.s32 2, %v988
        %v990 = vrot.slane %v985, %v989
        %v993 = vunpack.c.l.b16 %v983
        %v994 = vunpack.c.l.b16 %v990
        %v995 = vpack.c.b16 %v994, %v993
        %996 = vrot.lane.b32.xlu0 %v995, 18
        %v997 = vpop.permute.xlu0 %996
        %v998 = vrot.slane %v997, 4
        %vm999 = vcmask 146432
        %v1000 = vsel %vm999, %v998, %v997
        %v1003 = vmul.bf16 %v485, %v1000
        %v1004 = vmul.bf16 %v514, %v998
        %s1005 = scalar_lea.vmem %s5, 20
        %v1006 = vld [vmem:[%s1005] sm:$0xf]
        %v1009 = vunpack.c.l.b16 %v1003
        %v1010 = vunpack.c.h.b16 %v1003
        %v1011 = vunpack.c.l.b16 %v1004
        %v1012 = vpack.c.b16 %v1009, %v1009
        %v1013 = vpack.c.b16 %v1010, %v1010
        %v1014 = vpack.c.b16 %v1011, %v1011
        %1015 = vrot.lane.b32.xlu0 %v1012, 110
        %v1016 = vpop.permute.xlu0 %1015
        %1017 = vrot.lane.b32.xlu0 %v1013, 110
        %v1018 = vpop.permute.xlu0 %1017
        %1019 = vrot.lane.b32.xlu0 %v1014, 110
        %v1020 = vpop.permute.xlu0 %1019
        %vm1021 = vcmask 900096
        %v1022 = vsel %vm1021, %v1016, %v1018
        %v1023 = vsel %vm1021, %v1018, %v1020
        %v1025 = vsel %vm562, %v1006, 0
        %v1028 = vsel %vm566, %v1022, 0
        %v1031 = vsel %vm566, %v1023, 0
        %1033 = vmatprep.subr.bf16.mxu0 %v1031
        %1034 = vmatpush1.bf16.msra.mxu0 %v1028
        %1035 = vmatprep.subr.bf16.mxu0 0
        %1036 = vmatpush1.bf16.msra.mxu0 0
        %1037 = vmatprep.subr.bf16.mxu0 0
        %1038 = vmatpush1.bf16.msra.mxu0 0
        %1039 = vmatprep.subr.bf16.mxu0 0
        %1040 = vmatpush1.bf16.msra.mxu0 0
        %1041 = vmatprep.subr.bf16.mxu0 0
        %1042 = vmatpush1.bf16.msra.mxu0 0
        %1043 = vmatprep.subr.bf16.mxu0 0
        %1044 = vmatpush1.bf16.msra.mxu0 0
        %1045 = vmatprep.subr.bf16.mxu0 0
        %1046 = vmatpush1.bf16.msra.mxu0 0
        %1047 = vmatprep.subr.bf16.mxu0 0
        %1048 = vmatpush1.bf16.msra.mxu0 0
        %1049 = vmatprep.subr.bf16.mxu0 0
        %1050 = vmatpush1.bf16.msra.mxu0 0
        %1051 = vmatprep.subr.bf16.mxu0 0
        %1052 = vmatpush1.bf16.msra.mxu0 0
        %1053 = vmatprep.subr.bf16.mxu0 0
        %1054 = vmatpush1.bf16.msra.mxu0 0
        %1055 = vmatprep.subr.bf16.mxu0 0
        %1056 = vmatpush1.bf16.msra.mxu0 0
        %1057 = vmatprep.subr.bf16.mxu0 0
        %1058 = vmatpush1.bf16.msra.mxu0 0
        %1059 = vmatprep.subr.bf16.mxu0 0
        %1060 = vmatpush1.bf16.msra.mxu0 0
        %1061 = vmatprep.subr.bf16.mxu0 0
        %1062 = vmatpush1.bf16.msra.mxu0 0
        %1063 = vmatprep.subr.bf16.mxu0 0
        %1064 = vmatpush1.bf16.msra.mxu0 0
        %1065 = vmatprep.mubr.bf16.mxu0 0
        %1066 = vmatmul.mubr.bf16.gmra.mrb[0].mxu0 %v1025
        %v1067 = vpop.f32.mrb[0].mxu0
        %v1068 = vadd.f32 0.0, %v1067
        %v1069 = vpop.f32.mrb[0].mxu0
        %v1070 = vadd.f32 0.0, %v1069
        %v1071 = vpop.f32.mrb[0].mxu0
        %v1072 = vpop.f32.mrb[0].mxu0
        %1073 = vdwg.mxu0
        %v1074 = vadd.f32 %v975, %v1068
        %v1075 = vadd.f32 %v976, %v1070
        %v1076 = vld [vmem:[%s1] sm:$0x88]
        %v1078 = vunpack.c.l.b16 %v1076
        %v1079 = vunpack.c.h.b16 %v1076
        %v1080 = vpack.c.b16 %v1078, %v1078
        %v1081 = vpack.c.b16 %v1079, %v1079
        %v1083 = vpack.i.b16 %v1080, %v1080
        %v1085 = vlaneseq
        %v1086 = vshrl.u32 %v1085, 7
        %v1087 = vsub.s32 3, %v1086
        %v1088 = vrot.slane %v1083, %v1087
        %v1090 = vpack.i.b16 %v1081, %v1081
        %v1092 = vlaneseq
        %v1093 = vshrl.u32 %v1092, 7
        %v1094 = vsub.s32 3, %v1093
        %v1095 = vrot.slane %v1090, %v1094
        %v1098 = vunpack.c.l.b16 %v1088
        %v1099 = vunpack.c.l.b16 %v1095
        %v1100 = vpack.c.b16 %v1099, %v1098
        %1101 = vrot.lane.b32.xlu0 %v1100, 32
        %v1102 = vpop.permute.xlu0 %1101
        %v1103 = vrot.slane %v1102, 4
        %vm1104 = vcmask 261120
        %v1105 = vsel %vm1104, %v1103, %v1102
        %v1108 = vmul.bf16 %v485, %v1105
        %v1109 = vmul.bf16 %v514, %v1103
        %s1110 = scalar_lea.vmem %s5, 24
        %v1111 = vld [vmem:[%s1110] sm:$0xf]
        %v1114 = vunpack.c.l.b16 %v1108
        %v1115 = vunpack.c.h.b16 %v1108
        %v1116 = vunpack.c.l.b16 %v1109
        %v1117 = vpack.c.b16 %v1114, %v1114
        %v1118 = vpack.c.b16 %v1115, %v1115
        %v1119 = vpack.c.b16 %v1116, %v1116
        %1120 = vrot.lane.b32.xlu0 %v1117, 96
        %v1121 = vpop.permute.xlu0 %1120
        %1122 = vrot.lane.b32.xlu0 %v1118, 96
        %v1123 = vpop.permute.xlu0 %1122
        %1124 = vrot.lane.b32.xlu0 %v1119, 96
        %v1125 = vpop.permute.xlu0 %1124
        %vm1126 = vcmask 785408
        %v1127 = vsel %vm1126, %v1121, %v1123
        %v1128 = vsel %vm1126, %v1123, %v1125
        %v1130 = vsel %vm562, %v1111, 0
        %v1133 = vsel %vm566, %v1127, 0
        %v1136 = vsel %vm566, %v1128, 0
        %1138 = vmatprep.subr.bf16.mxu0 %v1136
        %1139 = vmatpush1.bf16.msra.mxu0 %v1133
        %1140 = vmatprep.subr.bf16.mxu0 0
        %1141 = vmatpush1.bf16.msra.mxu0 0
        %1142 = vmatprep.subr.bf16.mxu0 0
        %1143 = vmatpush1.bf16.msra.mxu0 0
        %1144 = vmatprep.subr.bf16.mxu0 0
        %1145 = vmatpush1.bf16.msra.mxu0 0
        %1146 = vmatprep.subr.bf16.mxu0 0
        %1147 = vmatpush1.bf16.msra.mxu0 0
        %1148 = vmatprep.subr.bf16.mxu0 0
        %1149 = vmatpush1.bf16.msra.mxu0 0
        %1150 = vmatprep.subr.bf16.mxu0 0
        %1151 = vmatpush1.bf16.msra.mxu0 0
        %1152 = vmatprep.subr.bf16.mxu0 0
        %1153 = vmatpush1.bf16.msra.mxu0 0
        %1154 = vmatprep.subr.bf16.mxu0 0
        %1155 = vmatpush1.bf16.msra.mxu0 0
        %1156 = vmatprep.subr.bf16.mxu0 0
        %1157 = vmatpush1.bf16.msra.mxu0 0
        %1158 = vmatprep.subr.bf16.mxu0 0
        %1159 = vmatpush1.bf16.msra.mxu0 0
        %1160 = vmatprep.subr.bf16.mxu0 0
        %1161 = vmatpush1.bf16.msra.mxu0 0
        %1162 = vmatprep.subr.bf16.mxu0 0
        %1163 = vmatpush1.bf16.msra.mxu0 0
        %1164 = vmatprep.subr.bf16.mxu0 0
        %1165 = vmatpush1.bf16.msra.mxu0 0
        %1166 = vmatprep.subr.bf16.mxu0 0
        %1167 = vmatpush1.bf16.msra.mxu0 0
        %1168 = vmatprep.subr.bf16.mxu0 0
        %1169 = vmatpush1.bf16.msra.mxu0 0
        %1170 = vmatprep.mubr.bf16.mxu0 0
        %1171 = vmatmul.mubr.bf16.gmra.mrb[0].mxu0 %v1130
        %v1172 = vpop.f32.mrb[0].mxu0
        %v1173 = vadd.f32 0.0, %v1172
        %v1174 = vpop.f32.mrb[0].mxu0
        %v1175 = vadd.f32 0.0, %v1174
        %v1176 = vpop.f32.mrb[0].mxu0
        %v1177 = vpop.f32.mrb[0].mxu0
        %1178 = vdwg.mxu0
        %v1179 = vadd.f32 %v1074, %v1173
        %v1180 = vadd.f32 %v1075, %v1175
        %v1181 = vshrl.u32 %v1080, 16
        %v1182 = vpack.i.b16 %v1181, %v1181
        %v1184 = vlaneseq
        %v1185 = vshrl.u32 %v1184, 7
        %v1186 = vsub.s32 3, %v1185
        %v1187 = vrot.slane %v1182, %v1186
        %v1188 = vshrl.u32 %v1081, 16
        %v1189 = vpack.i.b16 %v1188, %v1188
        %v1191 = vlaneseq
        %v1192 = vshrl.u32 %v1191, 7
        %v1193 = vsub.s32 3, %v1192
        %v1194 = vrot.slane %v1189, %v1193
        %v1197 = vunpack.c.l.b16 %v1187
        %v1198 = vunpack.c.l.b16 %v1194
        %v1199 = vpack.c.b16 %v1198, %v1197
        %1200 = vrot.lane.b32.xlu0 %v1199, 33
        %v1201 = vpop.permute.xlu0 %1200
        %v1202 = vrot.slane %v1201, 4
        %vm1203 = vcmask 269312
        %v1204 = vsel %vm1203, %v1202, %v1201
        %v1207 = vmul.bf16 %v485, %v1204
        %v1208 = vmul.bf16 %v514, %v1202
        %s1209 = scalar_lea.vmem %s5, 28
        %v1210 = vld [vmem:[%s1209] sm:$0xf]
        %v1213 = vunpack.c.l.b16 %v1207
        %v1214 = vunpack.c.h.b16 %v1207
        %v1215 = vunpack.c.l.b16 %v1208
        %v1216 = vpack.c.b16 %v1213, %v1213
        %v1217 = vpack.c.b16 %v1214, %v1214
        %v1218 = vpack.c.b16 %v1215, %v1215
        %1219 = vrot.lane.b32.xlu0 %v1216, 95
        %v1220 = vpop.permute.xlu0 %1219
        %1221 = vrot.lane.b32.xlu0 %v1217, 95
        %v1222 = vpop.permute.xlu0 %1221
        %1223 = vrot.lane.b32.xlu0 %v1218, 95
        %v1224 = vpop.permute.xlu0 %1223
        %vm1225 = vcmask 777216
        %v1226 = vsel %vm1225, %v1220, %v1222
        %v1227 = vsel %vm1225, %v1222, %v1224
        %v1229 = vsel %vm562, %v1210, 0
        %v1232 = vsel %vm566, %v1226, 0
        %v1235 = vsel %vm566, %v1227, 0
        %1237 = vmatprep.subr.bf16.mxu0 %v1235
        %1238 = vmatpush1.bf16.msra.mxu0 %v1232
        %1239 = vmatprep.subr.bf16.mxu0 0
        %1240 = vmatpush1.bf16.msra.mxu0 0
        %1241 = vmatprep.subr.bf16.mxu0 0
        %1242 = vmatpush1.bf16.msra.mxu0 0
        %1243 = vmatprep.subr.bf16.mxu0 0
        %1244 = vmatpush1.bf16.msra.mxu0 0
        %1245 = vmatprep.subr.bf16.mxu0 0
        %1246 = vmatpush1.bf16.msra.mxu0 0
        %1247 = vmatprep.subr.bf16.mxu0 0
        %1248 = vmatpush1.bf16.msra.mxu0 0
        %1249 = vmatprep.subr.bf16.mxu0 0
        %1250 = vmatpush1.bf16.msra.mxu0 0
        %1251 = vmatprep.subr.bf16.mxu0 0
        %1252 = vmatpush1.bf16.msra.mxu0 0
        %1253 = vmatprep.subr.bf16.mxu0 0
        %1254 = vmatpush1.bf16.msra.mxu0 0
        %1255 = vmatprep.subr.bf16.mxu0 0
        %1256 = vmatpush1.bf16.msra.mxu0 0
        %1257 = vmatprep.subr.bf16.mxu0 0
        %1258 = vmatpush1.bf16.msra.mxu0 0
        %1259 = vmatprep.subr.bf16.mxu0 0
        %1260 = vmatpush1.bf16.msra.mxu0 0
        %1261 = vmatprep.subr.bf16.mxu0 0
        %1262 = vmatpush1.bf16.msra.mxu0 0
        %1263 = vmatprep.subr.bf16.mxu0 0
        %1264 = vmatpush1.bf16.msra.mxu0 0
        %1265 = vmatprep.subr.bf16.mxu0 0
        %1266 = vmatpush1.bf16.msra.mxu0 0
        %1267 = vmatprep.subr.bf16.mxu0 0
        %1268 = vmatpush1.bf16.msra.mxu0 0
        %1269 = vmatprep.mubr.bf16.mxu0 0
        %1270 = vmatmul.mubr.bf16.gmra.mrb[0].mxu0 %v1229
        %v1271 = vpop.f32.mrb[0].mxu0
        %v1272 = vadd.f32 0.0, %v1271
        %v1273 = vpop.f32.mrb[0].mxu0
        %v1274 = vadd.f32 0.0, %v1273
        %v1275 = vpop.f32.mrb[0].mxu0
        %v1276 = vpop.f32.mrb[0].mxu0
        %1277 = vdwg.mxu0
        %v1278 = vadd.f32 %v1179, %v1272
        %v1279 = vadd.f32 %v1180, %v1274
        %v1280 = vld [vmem:[%s1 + $0x8] sm:$0x11]
        %v1282 = vunpack.c.l.b16 %v1280
        %v1283 = vunpack.c.h.b16 %v1280
        %v1284 = vpack.c.b16 %v1282, %v1282
        %v1285 = vpack.c.b16 %v1283, %v1283
        %v1287 = vpack.i.b16 %v1284, %v1284
        %v1289 = vlaneseq
        %v1290 = vshrl.u32 %v1289, 7
        %v1291 = vsub.s32 0, %v1290
        %v1292 = vrot.slane %v1287, %v1291
        %v1294 = vpack.i.b16 %v1285, %v1285
        %v1296 = vlaneseq
        %v1297 = vshrl.u32 %v1296, 7
        %v1298 = vsub.s32 0, %v1297
        %v1299 = vrot.slane %v1294, %v1298
        %v1302 = vunpack.c.l.b16 %v1292
        %v1303 = vunpack.c.l.b16 %v1299
        %v1304 = vpack.c.b16 %v1303, %v1302
        %1305 = vrot.lane.b32.xlu0 %v1304, 34
        %v1306 = vpop.permute.xlu0 %1305
        %v1307 = vrot.slane %v1306, 4
        %vm1308 = vcmask 277504
        %v1309 = vsel %vm1308, %v1307, %v1306
        %v1312 = vmul.bf16 %v485, %v1309
        %v1313 = vmul.bf16 %v514, %v1307
        %s1314 = scalar_lea.vmem %s5, 32
        %v1315 = vld [vmem:[%s1314] sm:$0xf]
        %v1318 = vunpack.c.l.b16 %v1312
        %v1319 = vunpack.c.h.b16 %v1312
        %v1320 = vunpack.c.l.b16 %v1313
        %v1321 = vpack.c.b16 %v1318, %v1318
        %v1322 = vpack.c.b16 %v1319, %v1319
        %v1323 = vpack.c.b16 %v1320, %v1320
        %1324 = vrot.lane.b32.xlu0 %v1321, 94
        %v1325 = vpop.permute.xlu0 %1324
        %1326 = vrot.lane.b32.xlu0 %v1322, 94
        %v1327 = vpop.permute.xlu0 %1326
        %1328 = vrot.lane.b32.xlu0 %v1323, 94
        %v1329 = vpop.permute.xlu0 %1328
        %vm1330 = vcmask 769024
        %v1331 = vsel %vm1330, %v1325, %v1327
        %v1332 = vsel %vm1330, %v1327, %v1329
        %v1334 = vsel %vm562, %v1315, 0
        %v1337 = vsel %vm566, %v1331, 0
        %v1340 = vsel %vm566, %v1332, 0
        %1342 = vmatprep.subr.bf16.mxu0 %v1340
        %1343 = vmatpush1.bf16.msra.mxu0 %v1337
        %1344 = vmatprep.subr.bf16.mxu0 0
        %1345 = vmatpush1.bf16.msra.mxu0 0
        %1346 = vmatprep.subr.bf16.mxu0 0
        %1347 = vmatpush1.bf16.msra.mxu0 0
        %1348 = vmatprep.subr.bf16.mxu0 0
        %1349 = vmatpush1.bf16.msra.mxu0 0
        %1350 = vmatprep.subr.bf16.mxu0 0
        %1351 = vmatpush1.bf16.msra.mxu0 0
        %1352 = vmatprep.subr.bf16.mxu0 0
        %1353 = vmatpush1.bf16.msra.mxu0 0
        %1354 = vmatprep.subr.bf16.mxu0 0
        %1355 = vmatpush1.bf16.msra.mxu0 0
        %1356 = vmatprep.subr.bf16.mxu0 0
        %1357 = vmatpush1.bf16.msra.mxu0 0
        %1358 = vmatprep.subr.bf16.mxu0 0
        %1359 = vmatpush1.bf16.msra.mxu0 0
        %1360 = vmatprep.subr.bf16.mxu0 0
        %1361 = vmatpush1.bf16.msra.mxu0 0
        %1362 = vmatprep.subr.bf16.mxu0 0
        %1363 = vmatpush1.bf16.msra.mxu0 0
        %1364 = vmatprep.subr.bf16.mxu0 0
        %1365 = vmatpush1.bf16.msra.mxu0 0
        %1366 = vmatprep.subr.bf16.mxu0 0
        %1367 = vmatpush1.bf16.msra.mxu0 0
        %1368 = vmatprep.subr.bf16.mxu0 0
        %1369 = vmatpush1.bf16.msra.mxu0 0
        %1370 = vmatprep.subr.bf16.mxu0 0
        %1371 = vmatpush1.bf16.msra.mxu0 0
        %1372 = vmatprep.subr.bf16.mxu0 0
        %1373 = vmatpush1.bf16.msra.mxu0 0
        %1374 = vmatprep.mubr.bf16.mxu0 0
        %1375 = vmatmul.mubr.bf16.gmra.mrb[0].mxu0 %v1334
        %v1376 = vpop.f32.mrb[0].mxu0
        %v1377 = vadd.f32 0.0, %v1376
        %v1378 = vpop.f32.mrb[0].mxu0
        %v1379 = vadd.f32 0.0, %v1378
        %v1380 = vpop.f32.mrb[0].mxu0
        %v1381 = vpop.f32.mrb[0].mxu0
        %1382 = vdwg.mxu0
        %v1383 = vadd.f32 %v1278, %v1377
        %v1384 = vadd.f32 %v1279, %v1379
        %v1385 = vld [vmem:[%s6] sm:$0xff]
        %1387 = vset.pattern.permute.xlu0 0
        %1388 = vperm.xlu0 %1387, %v1385
        %v1389 = vpop.permute.xlu0 %1388
        %v1391 = vmul.f32 %v1383, %v1389
        %v1392 = vmul.f32 %v1384, %v1389
        %v1393 = vld [vmem:[%s7] sm:$0xff]
        %1395 = vset.pattern.permute.xlu0 0
        %1396 = vperm.xlu0 %1395, %v1393
        %v1397 = vpop.permute.xlu0 %1396
        %v1399 = vadd.f32 %v1391, %v1397
        %v1400 = vadd.f32 %v1392, %v1397
        %v1401 = vmax.f32 %v1399, 0.0
        %v1402 = vmax.f32 %v1400, 0.0
        %v1403 = vpack.c.bf16 %v1401, %v1401
        %v1404 = vpack.c.bf16 %v1402, %v1402
        %v1405 = vld [vmem:[%s8] sm:$0xf]
        %v1406 = vld [vmem:[%s8 + $0x4] sm:$0xf]
        %v1407 = vld [vmem:[%s8 + $0x8] sm:$0xf]
        %v1408 = vld [vmem:[%s8 + $0xc] sm:$0xf]
        %v1413 = vunpack.c.l.b16 %v1405
        %v1414 = vunpack.c.l.b16 %v1406
        %v1415 = vunpack.c.l.b16 %v1407
        %v1416 = vunpack.c.l.b16 %v1408
        %v1417 = vpack.c.b16 %v1414, %v1413
        %v1418 = vpack.c.b16 %v1416, %v1415
        %v1420 = vsel %vm562, %v1417, 0
        %v1423 = vsel %vm562, %v1418, 0
        %v1426 = vsel %vm566, %v1403, 0
        %v1429 = vsel %vm566, %v1404, 0
        %1431 = vmatprep.subr.bf16.mxu0 %v1429
        %1432 = vmatpush1.bf16.msra.mxu0 %v1426
        %1433 = vmatprep.subr.bf16.mxu0 0
        %1434 = vmatpush1.bf16.msra.mxu0 0
        %1435 = vmatprep.subr.bf16.mxu0 0
        %1436 = vmatpush1.bf16.msra.mxu0 0
        %1437 = vmatprep.subr.bf16.mxu0 0
        %1438 = vmatpush1.bf16.msra.mxu0 0
        %1439 = vmatprep.subr.bf16.mxu0 0
        %1440 = vmatpush1.bf16.msra.mxu0 0
        %1441 = vmatprep.subr.bf16.mxu0 0
        %1442 = vmatpush1.bf16.msra.mxu0 0
        %1443 = vmatprep.subr.bf16.mxu0 0
        %1444 = vmatpush1.bf16.msra.mxu0 0
        %1445 = vmatprep.subr.bf16.mxu0 0
        %1446 = vmatpush1.bf16.msra.mxu0 0
        %1447 = vmatprep.subr.bf16.mxu0 0
        %1448 = vmatpush1.bf16.msra.mxu0 0
        %1449 = vmatprep.subr.bf16.mxu0 0
        %1450 = vmatpush1.bf16.msra.mxu0 0
        %1451 = vmatprep.subr.bf16.mxu0 0
        %1452 = vmatpush1.bf16.msra.mxu0 0
        %1453 = vmatprep.subr.bf16.mxu0 0
        %1454 = vmatpush1.bf16.msra.mxu0 0
        %1455 = vmatprep.subr.bf16.mxu0 0
        %1456 = vmatpush1.bf16.msra.mxu0 0
        %1457 = vmatprep.subr.bf16.mxu0 0
        %1458 = vmatpush1.bf16.msra.mxu0 0
        %1459 = vmatprep.subr.bf16.mxu0 0
        %1460 = vmatpush1.bf16.msra.mxu0 0
        %1461 = vmatprep.subr.bf16.mxu0 0
        %1462 = vmatpush1.bf16.msra.mxu0 0
        %1463 = vmatprep.mubr.bf16.mxu0 0
        %1464 = vmatmul.mubr.bf16.gmra.mrb[0].mxu0 %v1420
        %v1465 = vpop.f32.mrb[0].mxu0
        %v1466 = vadd.f32 0.0, %v1465
        %v1467 = vpop.f32.mrb[0].mxu0
        %v1468 = vadd.f32 0.0, %v1467
        %v1469 = vpop.f32.mrb[0].mxu0
        %v1470 = vadd.f32 0.0, %v1469
        %v1471 = vpop.f32.mrb[0].mxu0
        %v1472 = vadd.f32 0.0, %v1471
        %1473 = vmatprep.mubr.bf16.mxu0 0
        %1474 = vmatmul.mubr.bf16.gmra.mrb[0].mxu0 %v1423
        %v1475 = vpop.f32.mrb[0].mxu0
        %v1476 = vadd.f32 0.0, %v1475
        %v1477 = vpop.f32.mrb[0].mxu0
        %v1478 = vadd.f32 0.0, %v1477
        %v1479 = vpop.f32.mrb[0].mxu0
        %v1480 = vadd.f32 0.0, %v1479
        %v1481 = vpop.f32.mrb[0].mxu0
        %v1482 = vadd.f32 0.0, %v1481
        %1483 = vdwg.mxu0
        %v1484 = vld [vmem:[%s9] sm:$0xff]
        %v1485 = vld [vmem:[%s9 + $0x8] sm:$0xff]
        %v1486 = vld [vmem:[%s9 + $0x10] sm:$0xff]
        %v1487 = vld [vmem:[%s9 + $0x18] sm:$0xff]
        %1489 = vset.pattern.permute.xlu0 0
        %1490 = vperm.xlu0 %1489, %v1484
        %v1491 = vpop.permute.xlu0 %1490
        %1494 = vset.pattern.permute.xlu0 0
        %1495 = vperm.xlu0 %1494, %v1485
        %v1496 = vpop.permute.xlu0 %1495
        %1499 = vset.pattern.permute.xlu0 0
        %1500 = vperm.xlu0 %1499, %v1486
        %v1501 = vpop.permute.xlu0 %1500
        %1504 = vset.pattern.permute.xlu0 0
        %1505 = vperm.xlu0 %1504, %v1487
        %v1506 = vpop.permute.xlu0 %1505
        %v1508 = vmul.f32 %v1466, %v1491
        %v1509 = vmul.f32 %v1468, %v1491
        %v1510 = vmul.f32 %v1470, %v1496
        %v1511 = vmul.f32 %v1472, %v1496
        %v1512 = vmul.f32 %v1476, %v1501
        %v1513 = vmul.f32 %v1478, %v1501
        %v1514 = vmul.f32 %v1480, %v1506
        %v1515 = vmul.f32 %v1482, %v1506
        %v1516 = vld [vmem:[%s10] sm:$0xff]
        %v1517 = vld [vmem:[%s10 + $0x8] sm:$0xff]
        %v1518 = vld [vmem:[%s10 + $0x10] sm:$0xff]
        %v1519 = vld [vmem:[%s10 + $0x18] sm:$0xff]
        %1521 = vset.pattern.permute.xlu0 0
        %1522 = vperm.xlu0 %1521, %v1516
        %v1523 = vpop.permute.xlu0 %1522
        %1526 = vset.pattern.permute.xlu0 0
        %1527 = vperm.xlu0 %1526, %v1517
        %v1528 = vpop.permute.xlu0 %1527
        %1531 = vset.pattern.permute.xlu0 0
        %1532 = vperm.xlu0 %1531, %v1518
        %v1533 = vpop.permute.xlu0 %1532
        %1536 = vset.pattern.permute.xlu0 0
        %1537 = vperm.xlu0 %1536, %v1519
        %v1538 = vpop.permute.xlu0 %1537
        %v1540 = vadd.f32 %v1508, %v1523
        %v1541 = vadd.f32 %v1509, %v1523
        %v1542 = vadd.f32 %v1510, %v1528
        %v1543 = vadd.f32 %v1511, %v1528
        %v1544 = vadd.f32 %v1512, %v1533
        %v1545 = vadd.f32 %v1513, %v1533
        %v1546 = vadd.f32 %v1514, %v1538
        %v1547 = vadd.f32 %v1515, %v1538
        %v1548 = vadd.f32 %v1540, %v386
        %v1549 = vadd.f32 %v1541, %v387
        %v1550 = vadd.f32 %v1542, %v388
        %v1551 = vadd.f32 %v1543, %v389
        %v1552 = vadd.f32 %v1544, %v390
        %v1553 = vadd.f32 %v1545, %v391
        %v1554 = vadd.f32 %v1546, %v392
        %v1555 = vadd.f32 %v1547, %v393
        %v1556 = vmax.f32 %v1548, 0.0
        %v1557 = vmax.f32 %v1549, 0.0
        %v1558 = vmax.f32 %v1550, 0.0
        %v1559 = vmax.f32 %v1551, 0.0
        %v1560 = vmax.f32 %v1552, 0.0
        %v1561 = vmax.f32 %v1553, 0.0
        %v1562 = vmax.f32 %v1554, 0.0
        %v1563 = vmax.f32 %v1555, 0.0
        %1564 = vst [vmem:[%s379] sm:$0xff] %v1556
        %1565 = vst [vmem:[%s379 + $0x8] sm:$0xff] %v1557
        %1566 = vst [vmem:[%s379 + $0x10] sm:$0xff] %v1558
        %1567 = vst [vmem:[%s379 + $0x18] sm:$0xff] %v1559
        %1568 = vst [vmem:[%s379 + $0x20] sm:$0xff] %v1560
        %1569 = vst [vmem:[%s379 + $0x28] sm:$0xff] %v1561
        %1570 = vst [vmem:[%s379 + $0x30] sm:$0xff] %v1562
        %1571 = vst [vmem:[%s379 + $0x38] sm:$0xff] %v1563
        %s1572 = sand.u32 %s269, 1
        %s1573 = scalar_lea.sflag [#allocation4], %s1572
        %s1574 = sand.u32 %s269, 1
        %s1575 = smul.addr %s1574, 64
        %s1576 = scalar_lea.vmem [#allocation3], %s1575
        // Predicated region
        $region65: #{tpu_custom_call.1} parent=63 // pred_check
          %p1577 = pneg %p279
        $region66: #{tpu_custom_call.1} parent=63 // pred_check_branch
          %1579 = sbr.rel (%p1577) target = $region68
        $region67: #{tpu_custom_call.1} parent=63 // pred_region
          %s1581 = ssub.s32 1024, 1024
          %1582 = vsyncadd %s1573, %s1581
          %s1583 = smul.addr %s25, 8
          %s1584 = smul.addr %s1583, 128
          %s1585 = scalar_lea.hbm %s11, %s1584
          %s1586 = sshll.u32 %s1576, 4
          %s1587 = int_to_ptr.vmem [resolvable:$true] %s1586
          %1592 = dma.vmem_to_hbm [thread:$0]  %s1587, 1024, %s1585, %s1573, 256, 256, 16
        $region68: #{tpu_custom_call.1} parent=63 // pred_fallthru
          _
      $region64: #{tpu_custom_call.1} parent=5 // pred_fallthru
        _
      %p1593 = scmp.le.s32.totalorder 2, %s20
      // Predicated region
      $region69: #{tpu_custom_call.1} parent=5 // pred_check
        %p1594 = pneg %p1593
      $region70: #{tpu_custom_call.1} parent=5 // pred_check_branch
        %1596 = sbr.rel (%p1594) target = $region72
      $region71: #{tpu_custom_call.1} parent=5 // pred_region
        %s1597 = ssub.s32 %s20, 2
        // Predicated region
        $region73: #{tpu_custom_call.1} parent=71 // pred_check
          %p1598 = pneg %p285
        $region74: #{tpu_custom_call.1} parent=71 // pred_check_branch
          %1600 = sbr.rel (%p1598) target = $region76
        $region75: #{tpu_custom_call.1} parent=71 // pred_region
          %s1601 = sand.u32 %s270, 1
          %s1602 = scalar_lea.sflag [#allocation4], %s1601
          %s1603 = sand.u32 %s270, 1
          %s1604 = smul.addr %s1603, 64
          %s1605 = scalar_lea.vmem [#allocation3], %s1604
          %1606 = dma.done %s1602, 1024
        $region76: #{tpu_custom_call.1} parent=71 // pred_fallthru
          _
      $region72: #{tpu_custom_call.1} parent=5 // pred_fallthru
        _
    $region6: #{tpu_custom_call.1} parent=1 // loop_footer
      %s24 = sadd.s32 1, %s20
    $region7: #{tpu_custom_call.1} parent=1 // loop_footer_branch
      %19 = sbr.rel target = $region3
    $region8: #{tpu_custom_call.1} parent=1 // loop_exit
      _
    %1607 = vsyncpa [#allocation4], 1
    %s1608 = scalar_lea.sflag [#allocation4], 1
    %1609 = vsyncpa %s1608, 1

</llo_original>
